<compile_context>
chip_gen: v6e
topology: v6e:2x2x1
jax: 0.10.0
libtpu: 0.0.40
codegen_flags: <defaults>
</compile_context>

<pallas_src>
import functools

import jax
import jax.numpy as jnp
from jax import lax
from jax.experimental import pallas as pl
from jax.experimental.pallas import tpu as pltpu


def _lstm_fc_kernel(x_ref, wih_ref, whh_ref, b_ref, h0_ref, c0_ref,
                    wfc_ref, bfc_ref, out_ref,
                    gates_ref, hs_ref, h_carry_ref, c_carry_ref,
                    *, num_tiles, tail_valid):
    """Per-tile kernel: fused input GEMM + serial LSTM recurrence + FC GEMM.

    x_ref:       (TT, D)   input tile
    wih_ref:     (D, 4H)   W_ih^T, i/f/o columns pre-scaled by 0.5 (gate order i,f,g,o)
    whh_ref:     (H, 4H)   W_hh^T, i/f/o columns pre-scaled by 0.5
    b_ref:       (1, 4H)   (b_ih + b_hh), i/f/o entries pre-scaled by 0.5
    h0_ref:      (1, H)    initial hidden state
    c0_ref:      (1, H)    initial cell state
    wfc_ref:     (H, D)    W_fc^T
    bfc_ref:     (1, D)    b_fc
    out_ref:     (TT, D)   delta_lambda tile
    gates_ref:   (TT, 4H)  scratch: x @ W_ih^T + b for this tile
    hs_ref:      (TT, H)   scratch: hidden states for this tile
    h_carry_ref: (1, H)    persistent (across grid steps) hidden carry
    c_carry_ref: (1, H)    persistent cell carry
    """
    TT = x_ref.shape[0]
    H = hs_ref.shape[1]

    # Initialize the persistent carry on the first tile only.
    @pl.when(pl.program_id(0) == 0)
    def _():
        h_carry_ref[...] = h0_ref[...]
        c_carry_ref[...] = c0_ref[...]

    # Hot path 1: batched input projection (TT, D) @ (D, 4H) on the MXU.
    gates_ref[...] = (
        jnp.dot(x_ref[...], wih_ref[...], preferred_element_type=jnp.float32)
        + b_ref[...]
    )

    # Hoist the recurrent weight out of the serial loop (read once per tile).
    whh = whh_ref[...]

    # Clamp the serial trip count to the valid rows of this tile so padded-tail
    # steps are skipped (they are pure wasted latency on the serial chain).
    if num_tiles == 1:
        nblk = (tail_valid + 7) // 8                      # static
    else:
        valid = jnp.where(pl.program_id(0) == num_tiles - 1, tail_valid, TT)
        nblk = (valid + 7) // 8                           # clamped on last tile

    # Hot path 2: inherently serial LSTM recurrence, processed in blocks of 8
    # rows: one aligned (8, 4H) gate load, 8 statically-unrolled steps, one
    # aligned (8, H) hidden store.
    def block_step(j, carry):
        h, c = carry                                      # each (1, H)
        base = pl.multiple_of(j * 8, 8)
        g_blk = gates_ref[pl.ds(base, 8), :]              # aligned (8, 4H) load
        h_rows = []
        for r in range(8):                                # static unroll
            g = g_blk[r:r + 1, :] + jnp.dot(
                h, whh, preferred_element_type=jnp.float32)   # (1, 4H)
            # Single EUP push over all four gates; sigmoid(a) = 0.5*tanh(a/2)+0.5
            # with the 0.5 folded into the i/f/o weight columns at pack time.
            th = jnp.tanh(g)
            i_gate = 0.5 * th[:, 0 * H:1 * H] + 0.5
            f_gate = 0.5 * th[:, 1 * H:2 * H] + 0.5
            g_gate = th[:, 2 * H:3 * H]
            o_gate = 0.5 * th[:, 3 * H:4 * H] + 0.5
            c = f_gate * c + i_gate * g_gate
            h = o_gate * jnp.tanh(c)
            h_rows.append(h)
        hs_ref[pl.ds(base, 8), :] = jnp.concatenate(h_rows, axis=0)  # aligned store
        return (h, c)

    h_last, c_last = lax.fori_loop(
        0, nblk, block_step, (h_carry_ref[...], c_carry_ref[...]))
    h_carry_ref[...] = h_last
    c_carry_ref[...] = c_last

    # Hot path 3: output Linear layer (TT, H) @ (H, D) on the MXU.
    # Note: every row of hs_ref read here was written either this tile or a
    # previous (full) tile; padded-tail rows are sliced off in the wrapper.
    out_ref[...] = (
        jnp.dot(hs_ref[...], wfc_ref[...], preferred_element_type=jnp.float32)
        + bfc_ref[...]
    )


@functools.partial(
    jax.jit, static_argnames=("len_lambda", "hidden_size", "max_tile"))
def lambda_lstm_forward(grad_lambda, params, h_s=None, *, len_lambda,
                        hidden_size, max_tile=2048):
    """JAX wrapper mirroring lambda_LSTM.forward (returns delta_lambda only)."""
    x = grad_lambda.reshape(-1, len_lambda).astype(jnp.float32)
    T, D = x.shape
    H = hidden_size

    if h_s is None:
        h0 = jnp.zeros((1, H), jnp.float32)
        c0 = jnp.zeros((1, H), jnp.float32)
    else:
        h0 = h_s[0].reshape(1, H).astype(jnp.float32)
        c0 = h_s[1].reshape(1, H).astype(jnp.float32)

    # Tile the time axis. T is padded up to a multiple of 8 so the block-of-8
    # recurrence always applies; for T > max_tile it is padded to a multiple
    # of the tile size (the padded-tail steps are skipped inside the kernel).
    assert max_tile % 8 == 0, "max_tile must be a multiple of 8"
    T8 = pl.cdiv(T, 8) * 8
    TT = T8 if T8 <= max_tile else max_tile
    T_pad = pl.cdiv(T, TT) * TT
    num_tiles = T_pad // TT
    tail_valid = T - (num_tiles - 1) * TT   # valid rows in the last tile (1..TT)

    x_p = x if T_pad == T else jnp.pad(x, ((0, T_pad - T), (0, 0)))

    kernel = functools.partial(
        _lstm_fc_kernel, num_tiles=num_tiles, tail_valid=tail_valid)

    def full(shape):
        return pl.BlockSpec(shape, lambda i: (0, 0))

    out = pl.pallas_call(
        kernel,
        out_shape=jax.ShapeDtypeStruct((T_pad, D), jnp.float32),
        grid=(num_tiles,),
        in_specs=[
            pl.BlockSpec((TT, D), lambda i: (i, 0)),   # x tile
            full((D, 4 * H)),                          # W_ih^T (i/f/o pre-scaled)
            full((H, 4 * H)),                          # W_hh^T (i/f/o pre-scaled)
            full((1, 4 * H)),                          # b_ih + b_hh (pre-scaled)
            full((1, H)),                              # h0
            full((1, H)),                              # c0
            full((H, D)),                              # W_fc^T
            full((1, D)),                              # b_fc
        ],
        out_specs=pl.BlockSpec((TT, D), lambda i: (i, 0)),
        scratch_shapes=[
            pltpu.VMEM((TT, 4 * H), jnp.float32),      # per-tile gate pre-acts
            pltpu.VMEM((TT, H), jnp.float32),          # per-tile hidden states
            pltpu.VMEM((1, H), jnp.float32),           # h carry (persistent)
            pltpu.VMEM((1, H), jnp.float32),           # c carry (persistent)
        ],
        compiler_params=pltpu.CompilerParams(
            # The time-tile axis carries the (h, c) recurrence -> sequential.
            # Scratch is ~0.7 KB/row, so even TT=8192 fits v5e's 16 MiB
            # default scoped VMEM; no explicit vmem_limit_bytes needed.
            dimension_semantics=("arbitrary",),
        ),
    )(
        x_p,
        params["w_ih_t"],   # (D, 4H)
        params["w_hh_t"],   # (H, 4H)
        params["b"],        # (1, 4H)
        h0,
        c0,
        params["w_fc_t"],   # (H, D)
        params["b_fc"],     # (1, D)
    )

    return out[:T] if T_pad != T else out


def init_raw_params(key, len_lambda, hidden_size):
    """Raw PyTorch-layout parameters (uniform +-1/sqrt(H), like nn.LSTM/Linear)."""
    D, H = len_lambda, hidden_size
    bound = 1.0 / jnp.sqrt(jnp.float32(H))
    ks = jax.random.split(key, 6)
    u = lambda k, shape: jax.random.uniform(k, shape, jnp.float32, -bound, bound)
    return {
        "w_ih": u(ks[0], (4 * H, D)),   # PyTorch weight_ih_l0 (gate order i,f,g,o)
        "w_hh": u(ks[1], (4 * H, H)),   # PyTorch weight_hh_l0
        "b_ih": u(ks[2], (4 * H,)),
        "b_hh": u(ks[3], (4 * H,)),
        "w_fc": u(ks[4], (D, H)),       # nn.Linear weight
        "b_fc": u(ks[5], (D,)),
    }


def pack_params(raw, hidden_size):
    """Kernel-layout params: transposed, i/f/o gate columns pre-scaled by 0.5
    so that sigmoid(a) = 0.5*tanh(a/2) + 0.5 needs one tanh per step."""
    H = hidden_size
    D = raw["w_fc"].shape[0]
    scale = jnp.concatenate([
        jnp.full((2 * H,), 0.5, jnp.float32),   # i, f gates (sigmoid)
        jnp.ones((H,), jnp.float32),            # g gate (stays tanh)
        jnp.full((H,), 0.5, jnp.float32),       # o gate (sigmoid)
    ])
    return {
        "w_ih_t": (raw["w_ih"] * scale[:, None]).T,                 # (D, 4H)
        "w_hh_t": (raw["w_hh"] * scale[:, None]).T,                 # (H, 4H)
        "b": ((raw["b_ih"] + raw["b_hh"]) * scale).reshape(1, 4 * H),
        "w_fc_t": raw["w_fc"].T,                                     # (H, D)
        "b_fc": raw["b_fc"].reshape(1, D),
    }


def _reference_forward(grad_lambda, raw, len_lambda, hidden_size, h_s=None):
    """Pure-JAX reference (mirrors torch.nn.LSTM + nn.Linear with raw weights)."""
    x = grad_lambda.reshape(-1, len_lambda).astype(jnp.float32)
    H = hidden_size
    b = raw["b_ih"] + raw["b_hh"]

    def step(carry, xt):
        h, c = carry
        g = xt @ raw["w_ih"].T + h @ raw["w_hh"].T + b
        i = jax.nn.sigmoid(g[0 * H:1 * H])
        f = jax.nn.sigmoid(g[1 * H:2 * H])
        gg = jnp.tanh(g[2 * H:3 * H])
        o = jax.nn.sigmoid(g[3 * H:4 * H])
        c = f * c + i * gg
        h = o * jnp.tanh(c)
        return (h, c), h

    if h_s is None:
        h0 = jnp.zeros((H,), jnp.float32)
        c0 = jnp.zeros((H,), jnp.float32)
    else:
        h0 = h_s[0].reshape(H).astype(jnp.float32)
        c0 = h_s[1].reshape(H).astype(jnp.float32)
    _, hs = lax.scan(step, (h0, c0), x)
    return hs @ raw["w_fc"].T + raw["b_fc"]


if __name__ == "__main__":
    len_lambda = 8     # LSTM input_size and Linear output size
    hidden_size = 32   # arg_nn.hidden_size (4H = 128 lanes)

    key = jax.random.PRNGKey(0)
    k_param, k_x1, k_x2, k_x3, k_h = jax.random.split(key, 5)
    raw = init_raw_params(k_param, len_lambda, hidden_size)
    params = pack_params(raw, hidden_size)

    # Case 1: small input, single tile.  grad_lambda viewed as (-1, 8) -> T = 16.
    g1 = jax.random.normal(k_x1, (2, 8, 8), jnp.float32)
    d1 = jax.block_until_ready(lambda_lstm_forward(
        g1, params, len_lambda=len_lambda, hidden_size=hidden_size))
    r1 = _reference_forward(g1, raw, len_lambda, hidden_size)
    assert d1.shape == (16, len_lambda)
    assert jnp.allclose(d1, r1, atol=1e-4, rtol=1e-4), float(jnp.max(jnp.abs(d1 - r1)))

    # Case 2: tiled + carried state + clamped padded tail:
    # T = 40 rows, tile = 16 -> padded to 48 rows, 3 grid steps, tail_valid = 8.
    g2 = jax.random.normal(k_x2, (5, 8, 8), jnp.float32)
    d2 = jax.block_until_ready(lambda_lstm_forward(
        g2, params, len_lambda=len_lambda, hidden_size=hidden_size, max_tile=16))
    r2 = _reference_forward(g2, raw, len_lambda, hidden_size)
    assert d2.shape == (40, len_lambda)
    assert jnp.allclose(d2, r2, atol=1e-4, rtol=1e-4), float(jnp.max(jnp.abs(d2 - r2)))

    # Case 3: T not a multiple of 8 (T = 6, internally padded to 8, steps clamped).
    g3 = jax.random.normal(k_x3, (3, 2, 8), jnp.float32)
    d3 = jax.block_until_ready(lambda_lstm_forward(
        g3, params, len_lambda=len_lambda, hidden_size=hidden_size))
    r3 = _reference_forward(g3, raw, len_lambda, hidden_size)
    assert d3.shape == (6, len_lambda)
    assert jnp.allclose(d3, r3, atol=1e-4, rtol=1e-4), float(jnp.max(jnp.abs(d3 - r3)))

    # Case 4: user-provided initial hidden state h_s (PyTorch optional arg).
    h0 = 0.1 * jax.random.normal(k_h, (1, hidden_size), jnp.float32)
    c0 = 0.1 * jax.random.normal(jax.random.fold_in(k_h, 1),
                                 (1, hidden_size), jnp.float32)
    d4 = jax.block_until_ready(lambda_lstm_forward(
        g1, params, (h0, c0), len_lambda=len_lambda, hidden_size=hidden_size))
    r4 = _reference_forward(g1, raw, len_lambda, hidden_size, (h0, c0))
    assert jnp.allclose(d4, r4, atol=1e-4, rtol=1e-4), float(jnp.max(jnp.abs(d4 - r4)))

    print("KERNEL_OK")
</pallas_src>

<mosaic_0001>
module attributes {stable_mosaic.version = 11 : i64} {
  func.func @_lstm_fc_kernel(%arg0: i32, %arg1: memref<16x8xf32, #tpu.memory_space<vmem>>, %arg2: memref<8x128xf32, #tpu.memory_space<vmem>>, %arg3: memref<32x128xf32, #tpu.memory_space<vmem>>, %arg4: memref<1x128xf32, #tpu.memory_space<vmem>>, %arg5: memref<1x32xf32, #tpu.memory_space<vmem>>, %arg6: memref<1x32xf32, #tpu.memory_space<vmem>>, %arg7: memref<32x8xf32, #tpu.memory_space<vmem>>, %arg8: memref<1x8xf32, #tpu.memory_space<vmem>>, %arg9: memref<16x8xf32, #tpu.memory_space<vmem>>, %arg10: memref<16x128xf32, #tpu.memory_space<vmem>>, %arg11: memref<16x32xf32, #tpu.memory_space<vmem>>, %arg12: memref<1x32xf32, #tpu.memory_space<vmem>>, %arg13: memref<1x32xf32, #tpu.memory_space<vmem>>) attributes {dimension_semantics = [#tpu.dimension_semantics<arbitrary>], iteration_bounds = array<i64: 1>, scalar_prefetch = 0 : i64, scratch_operands = 4 : i64, tpu.core_type = #tpu.core_type<tc>, window_params = [{transform_indices = @transform_0, window_bounds = array<i64: 16, 8>}, {pipeline_mode = #tpu.pipeline_mode<synchronous>, transform_indices = @transform_1, window_bounds = array<i64: 8, 128>}, {pipeline_mode = #tpu.pipeline_mode<synchronous>, transform_indices = @transform_2, window_bounds = array<i64: 32, 128>}, {pipeline_mode = #tpu.pipeline_mode<synchronous>, transform_indices = @transform_3, window_bounds = array<i64: 1, 128>}, {pipeline_mode = #tpu.pipeline_mode<synchronous>, transform_indices = @transform_4, window_bounds = array<i64: 1, 32>}, {pipeline_mode = #tpu.pipeline_mode<synchronous>, transform_indices = @transform_5, window_bounds = array<i64: 1, 32>}, {pipeline_mode = #tpu.pipeline_mode<synchronous>, transform_indices = @transform_6, window_bounds = array<i64: 32, 8>}, {pipeline_mode = #tpu.pipeline_mode<synchronous>, transform_indices = @transform_7, window_bounds = array<i64: 1, 8>}, {transform_indices = @transform_8, window_bounds = array<i64: 16, 8>}]} {
    %c0_i32 = arith.constant 0 : i32
    %0 = arith.cmpi eq, %arg0, %c0_i32 : i32
    %1 = arith.extui %0 : i1 to i32
    %c0_i32_0 = arith.constant 0 : i32
    %2 = arith.cmpi ne, %1, %c0_i32_0 : i32
    scf.if %2 {
      %c0_29 = arith.constant 0 : index
      %c0_30 = arith.constant 0 : index
      %24 = vector.load %arg5[%c0_29, %c0_30] : memref<1x32xf32, #tpu.memory_space<vmem>>, vector<1x32xf32>
      %c0_31 = arith.constant 0 : index
      %c0_32 = arith.constant 0 : index
      %25 = vector.load %arg12[%c0_31, %c0_32] : memref<1x32xf32, #tpu.memory_space<vmem>>, vector<1x32xf32>
      tpu.vector_store %arg12[%c0_31, %c0_32], %24 {strides = array<i32>} : memref<1x32xf32, #tpu.memory_space<vmem>>, vector<1x32xf32>,
      %c0_33 = arith.constant 0 : index
      %c0_34 = arith.constant 0 : index
      %26 = vector.load %arg6[%c0_33, %c0_34] : memref<1x32xf32, #tpu.memory_space<vmem>>, vector<1x32xf32>
      %c0_35 = arith.constant 0 : index
      %c0_36 = arith.constant 0 : index
      %27 = vector.load %arg13[%c0_35, %c0_36] : memref<1x32xf32, #tpu.memory_space<vmem>>, vector<1x32xf32>
      tpu.vector_store %arg13[%c0_35, %c0_36], %26 {strides = array<i32>} : memref<1x32xf32, #tpu.memory_space<vmem>>, vector<1x32xf32>,
    } else {
    }
    %c0 = arith.constant 0 : index
    %c0_1 = arith.constant 0 : index
    %3 = vector.load %arg1[%c0, %c0_1] : memref<16x8xf32, #tpu.memory_space<vmem>>, vector<16x8xf32>
    %c0_2 = arith.constant 0 : index
    %c0_3 = arith.constant 0 : index
    %4 = vector.load %arg2[%c0_2, %c0_3] : memref<8x128xf32, #tpu.memory_space<vmem>>, vector<8x128xf32>
    %cst = arith.constant dense<0.000000e+00> : vector<16x128xf32>
    %5 = tpu.matmul %3, %4, %cst {dimension_numbers = #tpu.dot_dimension_numbers<[1], [0], [0], [1], [0, 0, 1, 1], [], []>} : vector<16x8xf32>, vector<8x128xf32>, vector<16x128xf32> -> vector<16x128xf32>
    %c0_4 = arith.constant 0 : index
    %c0_5 = arith.constant 0 : index
    %6 = vector.load %arg4[%c0_4, %c0_5] : memref<1x128xf32, #tpu.memory_space<vmem>>, vector<1x128xf32>
    %7 = vector.broadcast %6 : vector<1x128xf32> to vector<16x128xf32>
    %8 = arith.addf %5, %7 : vector<16x128xf32>
    %c0_6 = arith.constant 0 : index
    %c0_7 = arith.constant 0 : index
    %9 = vector.load %arg10[%c0_6, %c0_7] : memref<16x128xf32, #tpu.memory_space<vmem>>, vector<16x128xf32>
    tpu.vector_store %arg10[%c0_6, %c0_7], %8 {strides = array<i32>} : memref<16x128xf32, #tpu.memory_space<vmem>>, vector<16x128xf32>,
    %c0_8 = arith.constant 0 : index
    %c0_9 = arith.constant 0 : index
    %10 = vector.load %arg3[%c0_8, %c0_9] : memref<32x128xf32, #tpu.memory_space<vmem>>, vector<32x128xf32>
    %c0_10 = arith.constant 0 : index
    %c0_11 = arith.constant 0 : index
    %11 = vector.load %arg12[%c0_10, %c0_11] : memref<1x32xf32, #tpu.memory_space<vmem>>, vector<1x32xf32>
    %c0_12 = arith.constant 0 : index
    %c0_13 = arith.constant 0 : index
    %12 = vector.load %arg13[%c0_12, %c0_13] : memref<1x32xf32, #tpu.memory_space<vmem>>, vector<1x32xf32>
    %c0_i32_14 = arith.constant 0 : i32
    %c2_i32 = arith.constant 2 : i32
    %13 = arith.addi %c0_i32_14, %c2_i32 : i32
    %c1_i32 = arith.constant 1 : i32
    %14:2 = scf.for %arg14 = %c0_i32_14 to %13 step %c1_i32 iter_args(%arg15 = %11, %arg16 = %12) -> (vector<1x32xf32>, vector<1x32xf32>)  : i32 {
      %c8_i32 = arith.constant 8 : i32
      %24 = arith.muli %arg14, %c8_i32 : i32
      %25 = tpu.assume_multiple %24, 8 : i32
      %26 = arith.index_cast %25 : i32 to index
      %c0_29 = arith.constant 0 : index
      %27 = vector.load %arg10[%26, %c0_29] : memref<16x128xf32, #tpu.memory_space<vmem>>, vector<8x128xf32>
      %28 = vector.extract_strided_slice %27 {offsets = [0, 0], sizes = [1, 128], strides = [1, 1]} : vector<8x128xf32> to vector<1x128xf32>
      %cst_30 = arith.constant dense<0.000000e+00> : vector<1x128xf32>
      %29 = tpu.matmul %arg15, %10, %cst_30 {dimension_numbers = #tpu.dot_dimension_numbers<[1], [0], [0], [1], [0, 0, 1, 1], [], []>} : vector<1x32xf32>, vector<32x128xf32>, vector<1x128xf32> -> vector<1x128xf32>
      %30 = arith.addf %28, %29 : vector<1x128xf32>
      %31 = math.tanh %30 : vector<1x128xf32>
      %32 = vector.extract_strided_slice %31 {offsets = [0, 0], sizes = [1, 32], strides = [1, 1]} : vector<1x128xf32> to vector<1x32xf32>
      %cst_31 = arith.constant 5.000000e-01 : f32
      %33 = vector.broadcast %cst_31 : f32 to vector<1x32xf32>
      %34 = arith.mulf %33, %32 : vector<1x32xf32>
      %cst_32 = arith.constant 5.000000e-01 : f32
      %35 = vector.broadcast %cst_32 : f32 to vector<1x32xf32>
      %36 = arith.addf %34, %35 : vector<1x32xf32>
      %37 = vector.extract_strided_slice %31 {offsets = [0, 32], sizes = [1, 32], strides = [1, 1]} : vector<1x128xf32> to vector<1x32xf32>
      %cst_33 = arith.constant 5.000000e-01 : f32
      %38 = vector.broadcast %cst_33 : f32 to vector<1x32xf32>
      %39 = arith.mulf %38, %37 : vector<1x32xf32>
      %cst_34 = arith.constant 5.000000e-01 : f32
      %40 = vector.broadcast %cst_34 : f32 to vector<1x32xf32>
      %41 = arith.addf %39, %40 : vector<1x32xf32>
      %42 = vector.extract_strided_slice %31 {offsets = [0, 64], sizes = [1, 32], strides = [1, 1]} : vector<1x128xf32> to vector<1x32xf32>
      %43 = vector.extract_strided_slice %31 {offsets = [0, 96], sizes = [1, 32], strides = [1, 1]} : vector<1x128xf32> to vector<1x32xf32>
      %cst_35 = arith.constant 5.000000e-01 : f32
      %44 = vector.broadcast %cst_35 : f32 to vector<1x32xf32>
      %45 = arith.mulf %44, %43 : vector<1x32xf32>
      %cst_36 = arith.constant 5.000000e-01 : f32
      %46 = vector.broadcast %cst_36 : f32 to vector<1x32xf32>
      %47 = arith.addf %45, %46 : vector<1x32xf32>
      %48 = arith.mulf %41, %arg16 : vector<1x32xf32>
      %49 = arith.mulf %36, %42 : vector<1x32xf32>
      %50 = arith.addf %48, %49 : vector<1x32xf32>
      %51 = math.tanh %50 : vector<1x32xf32>
      %52 = arith.mulf %47, %51 : vector<1x32xf32>
      %53 = vector.extract_strided_slice %27 {offsets = [1, 0], sizes = [1, 128], strides = [1, 1]} : vector<8x128xf32> to vector<1x128xf32>
      %cst_37 = arith.constant dense<0.000000e+00> : vector<1x128xf32>
      %54 = tpu.matmul %52, %10, %cst_37 {dimension_numbers = #tpu.dot_dimension_numbers<[1], [0], [0], [1], [0, 0, 1, 1], [], []>} : vector<1x32xf32>, vector<32x128xf32>, vector<1x128xf32> -> vector<1x128xf32>
      %55 = arith.addf %53, %54 : vector<1x128xf32>
      %56 = math.tanh %55 : vector<1x128xf32>
      %57 = vector.extract_strided_slice %56 {offsets = [0, 0], sizes = [1, 32], strides = [1, 1]} : vector<1x128xf32> to vector<1x32xf32>
      %cst_38 = arith.constant 5.000000e-01 : f32
      %58 = vector.broadcast %cst_38 : f32 to vector<1x32xf32>
      %59 = arith.mulf %58, %57 : vector<1x32xf32>
      %cst_39 = arith.constant 5.000000e-01 : f32
      %60 = vector.broadcast %cst_39 : f32 to vector<1x32xf32>
      %61 = arith.addf %59, %60 : vector<1x32xf32>
      %62 = vector.extract_strided_slice %56 {offsets = [0, 32], sizes = [1, 32], strides = [1, 1]} : vector<1x128xf32> to vector<1x32xf32>
      %cst_40 = arith.constant 5.000000e-01 : f32
      %63 = vector.broadcast %cst_40 : f32 to vector<1x32xf32>
      %64 = arith.mulf %63, %62 : vector<1x32xf32>
      %cst_41 = arith.constant 5.000000e-01 : f32
      %65 = vector.broadcast %cst_41 : f32 to vector<1x32xf32>
      %66 = arith.addf %64, %65 : vector<1x32xf32>
      %67 = vector.extract_strided_slice %56 {offsets = [0, 64], sizes = [1, 32], strides = [1, 1]} : vector<1x128xf32> to vector<1x32xf32>
      %68 = vector.extract_strided_slice %56 {offsets = [0, 96], sizes = [1, 32], strides = [1, 1]} : vector<1x128xf32> to vector<1x32xf32>
      %cst_42 = arith.constant 5.000000e-01 : f32
      %69 = vector.broadcast %cst_42 : f32 to vector<1x32xf32>
      %70 = arith.mulf %69, %68 : vector<1x32xf32>
      %cst_43 = arith.constant 5.000000e-01 : f32
      %71 = vector.broadcast %cst_43 : f32 to vector<1x32xf32>
      %72 = arith.addf %70, %71 : vector<1x32xf32>
      %73 = arith.mulf %66, %50 : vector<1x32xf32>
      %74 = arith.mulf %61, %67 : vector<1x32xf32>
      %75 = arith.addf %73, %74 : vector<1x32xf32>
      %76 = math.tanh %75 : vector<1x32xf32>
      %77 = arith.mulf %72, %76 : vector<1x32xf32>
      %78 = vector.extract_strided_slice %27 {offsets = [2, 0], sizes = [1, 128], strides = [1, 1]} : vector<8x128xf32> to vector<1x128xf32>
      %cst_44 = arith.constant dense<0.000000e+00> : vector<1x128xf32>
      %79 = tpu.matmul %77, %10, %cst_44 {dimension_numbers = #tpu.dot_dimension_numbers<[1], [0], [0], [1], [0, 0, 1, 1], [], []>} : vector<1x32xf32>, vector<32x128xf32>, vector<1x128xf32> -> vector<1x128xf32>
      %80 = arith.addf %78, %79 : vector<1x128xf32>
      %81 = math.tanh %80 : vector<1x128xf32>
      %82 = vector.extract_strided_slice %81 {offsets = [0, 0], sizes = [1, 32], strides = [1, 1]} : vector<1x128xf32> to vector<1x32xf32>
      %cst_45 = arith.constant 5.000000e-01 : f32
      %83 = vector.broadcast %cst_45 : f32 to vector<1x32xf32>
      %84 = arith.mulf %83, %82 : vector<1x32xf32>
      %cst_46 = arith.constant 5.000000e-01 : f32
      %85 = vector.broadcast %cst_46 : f32 to vector<1x32xf32>
      %86 = arith.addf %84, %85 : vector<1x32xf32>
      %87 = vector.extract_strided_slice %81 {offsets = [0, 32], sizes = [1, 32], strides = [1, 1]} : vector<1x128xf32> to vector<1x32xf32>
      %cst_47 = arith.constant 5.000000e-01 : f32
      %88 = vector.broadcast %cst_47 : f32 to vector<1x32xf32>
      %89 = arith.mulf %88, %87 : vector<1x32xf32>
      %cst_48 = arith.constant 5.000000e-01 : f32
      %90 = vector.broadcast %cst_48 : f32 to vector<1x32xf32>
      %91 = arith.addf %89, %90 : vector<1x32xf32>
      %92 = vector.extract_strided_slice %81 {offsets = [0, 64], sizes = [1, 32], strides = [1, 1]} : vector<1x128xf32> to vector<1x32xf32>
      %93 = vector.extract_strided_slice %81 {offsets = [0, 96], sizes = [1, 32], strides = [1, 1]} : vector<1x128xf32> to vector<1x32xf32>
      %cst_49 = arith.constant 5.000000e-01 : f32
      %94 = vector.broadcast %cst_49 : f32 to vector<1x32xf32>
      %95 = arith.mulf %94, %93 : vector<1x32xf32>
      %cst_50 = arith.constant 5.000000e-01 : f32
      %96 = vector.broadcast %cst_50 : f32 to vector<1x32xf32>
      %97 = arith.addf %95, %96 : vector<1x32xf32>
      %98 = arith.mulf %91, %75 : vector<1x32xf32>
      %99 = arith.mulf %86, %92 : vector<1x32xf32>
      %100 = arith.addf %98, %99 : vector<1x32xf32>
      %101 = math.tanh %100 : vector<1x32xf32>
      %102 = arith.mulf %97, %101 : vector<1x32xf32>
      %103 = vector.extract_strided_slice %27 {offsets = [3, 0], sizes = [1, 128], strides = [1, 1]} : vector<8x128xf32> to vector<1x128xf32>
      %cst_51 = arith.constant dense<0.000000e+00> : vector<1x128xf32>
      %104 = tpu.matmul %102, %10, %cst_51 {dimension_numbers = #tpu.dot_dimension_numbers<[1], [0], [0], [1], [0, 0, 1, 1], [], []>} : vector<1x32xf32>, vector<32x128xf32>, vector<1x128xf32> -> vector<1x128xf32>
      %105 = arith.addf %103, %104 : vector<1x128xf32>
      %106 = math.tanh %105 : vector<1x128xf32>
      %107 = vector.extract_strided_slice %106 {offsets = [0, 0], sizes = [1, 32], strides = [1, 1]} : vector<1x128xf32> to vector<1x32xf32>
      %cst_52 = arith.constant 5.000000e-01 : f32
      %108 = vector.broadcast %cst_52 : f32 to vector<1x32xf32>
      %109 = arith.mulf %108, %107 : vector<1x32xf32>
      %cst_53 = arith.constant 5.000000e-01 : f32
      %110 = vector.broadcast %cst_53 : f32 to vector<1x32xf32>
      %111 = arith.addf %109, %110 : vector<1x32xf32>
      %112 = vector.extract_strided_slice %106 {offsets = [0, 32], sizes = [1, 32], strides = [1, 1]} : vector<1x128xf32> to vector<1x32xf32>
      %cst_54 = arith.constant 5.000000e-01 : f32
      %113 = vector.broadcast %cst_54 : f32 to vector<1x32xf32>
      %114 = arith.mulf %113, %112 : vector<1x32xf32>
      %cst_55 = arith.constant 5.000000e-01 : f32
      %115 = vector.broadcast %cst_55 : f32 to vector<1x32xf32>
      %116 = arith.addf %114, %115 : vector<1x32xf32>
      %117 = vector.extract_strided_slice %106 {offsets = [0, 64], sizes = [1, 32], strides = [1, 1]} : vector<1x128xf32> to vector<1x32xf32>
      %118 = vector.extract_strided_slice %106 {offsets = [0, 96], sizes = [1, 32], strides = [1, 1]} : vector<1x128xf32> to vector<1x32xf32>
      %cst_56 = arith.constant 5.000000e-01 : f32
      %119 = vector.broadcast %cst_56 : f32 to vector<1x32xf32>
      %120 = arith.mulf %119, %118 : vector<1x32xf32>
      %cst_57 = arith.constant 5.000000e-01 : f32
      %121 = vector.broadcast %cst_57 : f32 to vector<1x32xf32>
      %122 = arith.addf %120, %121 : vector<1x32xf32>
      %123 = arith.mulf %116, %100 : vector<1x32xf32>
      %124 = arith.mulf %111, %117 : vector<1x32xf32>
      %125 = arith.addf %123, %124 : vector<1x32xf32>
      %126 = math.tanh %125 : vector<1x32xf32>
      %127 = arith.mulf %122, %126 : vector<1x32xf32>
      %128 = vector.extract_strided_slice %27 {offsets = [4, 0], sizes = [1, 128], strides = [1, 1]} : vector<8x128xf32> to vector<1x128xf32>
      %cst_58 = arith.constant dense<0.000000e+00> : vector<1x128xf32>
      %129 = tpu.matmul %127, %10, %cst_58 {dimension_numbers = #tpu.dot_dimension_numbers<[1], [0], [0], [1], [0, 0, 1, 1], [], []>} : vector<1x32xf32>, vector<32x128xf32>, vector<1x128xf32> -> vector<1x128xf32>
      %130 = arith.addf %128, %129 : vector<1x128xf32>
      %131 = math.tanh %130 : vector<1x128xf32>
      %132 = vector.extract_strided_slice %131 {offsets = [0, 0], sizes = [1, 32], strides = [1, 1]} : vector<1x128xf32> to vector<1x32xf32>
      %cst_59 = arith.constant 5.000000e-01 : f32
      %133 = vector.broadcast %cst_59 : f32 to vector<1x32xf32>
      %134 = arith.mulf %133, %132 : vector<1x32xf32>
      %cst_60 = arith.constant 5.000000e-01 : f32
      %135 = vector.broadcast %cst_60 : f32 to vector<1x32xf32>
      %136 = arith.addf %134, %135 : vector<1x32xf32>
      %137 = vector.extract_strided_slice %131 {offsets = [0, 32], sizes = [1, 32], strides = [1, 1]} : vector<1x128xf32> to vector<1x32xf32>
      %cst_61 = arith.constant 5.000000e-01 : f32
      %138 = vector.broadcast %cst_61 : f32 to vector<1x32xf32>
      %139 = arith.mulf %138, %137 : vector<1x32xf32>
      %cst_62 = arith.constant 5.000000e-01 : f32
      %140 = vector.broadcast %cst_62 : f32 to vector<1x32xf32>
      %141 = arith.addf %139, %140 : vector<1x32xf32>
      %142 = vector.extract_strided_slice %131 {offsets = [0, 64], sizes = [1, 32], strides = [1, 1]} : vector<1x128xf32> to vector<1x32xf32>
      %143 = vector.extract_strided_slice %131 {offsets = [0, 96], sizes = [1, 32], strides = [1, 1]} : vector<1x128xf32> to vector<1x32xf32>
      %cst_63 = arith.constant 5.000000e-01 : f32
      %144 = vector.broadcast %cst_63 : f32 to vector<1x32xf32>
      %145 = arith.mulf %144, %143 : vector<1x32xf32>
      %cst_64 = arith.constant 5.000000e-01 : f32
      %146 = vector.broadcast %cst_64 : f32 to vector<1x32xf32>
      %147 = arith.addf %145, %146 : vector<1x32xf32>
      %148 = arith.mulf %141, %125 : vector<1x32xf32>
      %149 = arith.mulf %136, %142 : vector<1x32xf32>
      %150 = arith.addf %148, %149 : vector<1x32xf32>
      %151 = math.tanh %150 : vector<1x32xf32>
      %152 = arith.mulf %147, %151 : vector<1x32xf32>
      %153 = vector.extract_strided_slice %27 {offsets = [5, 0], sizes = [1, 128], strides = [1, 1]} : vector<8x128xf32> to vector<1x128xf32>
      %cst_65 = arith.constant dense<0.000000e+00> : vector<1x128xf32>
      %154 = tpu.matmul %152, %10, %cst_65 {dimension_numbers = #tpu.dot_dimension_numbers<[1], [0], [0], [1], [0, 0, 1, 1], [], []>} : vector<1x32xf32>, vector<32x128xf32>, vector<1x128xf32> -> vector<1x128xf32>
      %155 = arith.addf %153, %154 : vector<1x128xf32>
      %156 = math.tanh %155 : vector<1x128xf32>
      %157 = vector.extract_strided_slice %156 {offsets = [0, 0], sizes = [1, 32], strides = [1, 1]} : vector<1x128xf32> to vector<1x32xf32>
      %cst_66 = arith.constant 5.000000e-01 : f32
      %158 = vector.broadcast %cst_66 : f32 to vector<1x32xf32>
      %159 = arith.mulf %158, %157 : vector<1x32xf32>
      %cst_67 = arith.constant 5.000000e-01 : f32
      %160 = vector.broadcast %cst_67 : f32 to vector<1x32xf32>
      %161 = arith.addf %159, %160 : vector<1x32xf32>
      %162 = vector.extract_strided_slice %156 {offsets = [0, 32], sizes = [1, 32], strides = [1, 1]} : vector<1x128xf32> to vector<1x32xf32>
      %cst_68 = arith.constant 5.000000e-01 : f32
      %163 = vector.broadcast %cst_68 : f32 to vector<1x32xf32>
      %164 = arith.mulf %163, %162 : vector<1x32xf32>
      %cst_69 = arith.constant 5.000000e-01 : f32
      %165 = vector.broadcast %cst_69 : f32 to vector<1x32xf32>
      %166 = arith.addf %164, %165 : vector<1x32xf32>
      %167 = vector.extract_strided_slice %156 {offsets = [0, 64], sizes = [1, 32], strides = [1, 1]} : vector<1x128xf32> to vector<1x32xf32>
      %168 = vector.extract_strided_slice %156 {offsets = [0, 96], sizes = [1, 32], strides = [1, 1]} : vector<1x128xf32> to vector<1x32xf32>
      %cst_70 = arith.constant 5.000000e-01 : f32
      %169 = vector.broadcast %cst_70 : f32 to vector<1x32xf32>
      %170 = arith.mulf %169, %168 : vector<1x32xf32>
      %cst_71 = arith.constant 5.000000e-01 : f32
      %171 = vector.broadcast %cst_71 : f32 to vector<1x32xf32>
      %172 = arith.addf %170, %171 : vector<1x32xf32>
      %173 = arith.mulf %166, %150 : vector<1x32xf32>
      %174 = arith.mulf %161, %167 : vector<1x32xf32>
      %175 = arith.addf %173, %174 : vector<1x32xf32>
      %176 = math.tanh %175 : vector<1x32xf32>
      %177 = arith.mulf %172, %176 : vector<1x32xf32>
      %178 = vector.extract_strided_slice %27 {offsets = [6, 0], sizes = [1, 128], strides = [1, 1]} : vector<8x128xf32> to vector<1x128xf32>
      %cst_72 = arith.constant dense<0.000000e+00> : vector<1x128xf32>
      %179 = tpu.matmul %177, %10, %cst_72 {dimension_numbers = #tpu.dot_dimension_numbers<[1], [0], [0], [1], [0, 0, 1, 1], [], []>} : vector<1x32xf32>, vector<32x128xf32>, vector<1x128xf32> -> vector<1x128xf32>
      %180 = arith.addf %178, %179 : vector<1x128xf32>
      %181 = math.tanh %180 : vector<1x128xf32>
      %182 = vector.extract_strided_slice %181 {offsets = [0, 0], sizes = [1, 32], strides = [1, 1]} : vector<1x128xf32> to vector<1x32xf32>
      %cst_73 = arith.constant 5.000000e-01 : f32
      %183 = vector.broadcast %cst_73 : f32 to vector<1x32xf32>
      %184 = arith.mulf %183, %182 : vector<1x32xf32>
      %cst_74 = arith.constant 5.000000e-01 : f32
      %185 = vector.broadcast %cst_74 : f32 to vector<1x32xf32>
      %186 = arith.addf %184, %185 : vector<1x32xf32>
      %187 = vector.extract_strided_slice %181 {offsets = [0, 32], sizes = [1, 32], strides = [1, 1]} : vector<1x128xf32> to vector<1x32xf32>
      %cst_75 = arith.constant 5.000000e-01 : f32
      %188 = vector.broadcast %cst_75 : f32 to vector<1x32xf32>
      %189 = arith.mulf %188, %187 : vector<1x32xf32>
      %cst_76 = arith.constant 5.000000e-01 : f32
      %190 = vector.broadcast %cst_76 : f32 to vector<1x32xf32>
      %191 = arith.addf %189, %190 : vector<1x32xf32>
      %192 = vector.extract_strided_slice %181 {offsets = [0, 64], sizes = [1, 32], strides = [1, 1]} : vector<1x128xf32> to vector<1x32xf32>
      %193 = vector.extract_strided_slice %181 {offsets = [0, 96], sizes = [1, 32], strides = [1, 1]} : vector<1x128xf32> to vector<1x32xf32>
      %cst_77 = arith.constant 5.000000e-01 : f32
      %194 = vector.broadcast %cst_77 : f32 to vector<1x32xf32>
      %195 = arith.mulf %194, %193 : vector<1x32xf32>
      %cst_78 = arith.constant 5.000000e-01 : f32
      %196 = vector.broadcast %cst_78 : f32 to vector<1x32xf32>
      %197 = arith.addf %195, %196 : vector<1x32xf32>
      %198 = arith.mulf %191, %175 : vector<1x32xf32>
      %199 = arith.mulf %186, %192 : vector<1x32xf32>
      %200 = arith.addf %198, %199 : vector<1x32xf32>
      %201 = math.tanh %200 : vector<1x32xf32>
      %202 = arith.mulf %197, %201 : vector<1x32xf32>
      %203 = vector.extract_strided_slice %27 {offsets = [7, 0], sizes = [1, 128], strides = [1, 1]} : vector<8x128xf32> to vector<1x128xf32>
      %cst_79 = arith.constant dense<0.000000e+00> : vector<1x128xf32>
      %204 = tpu.matmul %202, %10, %cst_79 {dimension_numbers = #tpu.dot_dimension_numbers<[1], [0], [0], [1], [0, 0, 1, 1], [], []>} : vector<1x32xf32>, vector<32x128xf32>, vector<1x128xf32> -> vector<1x128xf32>
      %205 = arith.addf %203, %204 : vector<1x128xf32>
      %206 = math.tanh %205 : vector<1x128xf32>
      %207 = vector.extract_strided_slice %206 {offsets = [0, 0], sizes = [1, 32], strides = [1, 1]} : vector<1x128xf32> to vector<1x32xf32>
      %cst_80 = arith.constant 5.000000e-01 : f32
      %208 = vector.broadcast %cst_80 : f32 to vector<1x32xf32>
      %209 = arith.mulf %208, %207 : vector<1x32xf32>
      %cst_81 = arith.constant 5.000000e-01 : f32
      %210 = vector.broadcast %cst_81 : f32 to vector<1x32xf32>
      %211 = arith.addf %209, %210 : vector<1x32xf32>
      %212 = vector.extract_strided_slice %206 {offsets = [0, 32], sizes = [1, 32], strides = [1, 1]} : vector<1x128xf32> to vector<1x32xf32>
      %cst_82 = arith.constant 5.000000e-01 : f32
      %213 = vector.broadcast %cst_82 : f32 to vector<1x32xf32>
      %214 = arith.mulf %213, %212 : vector<1x32xf32>
      %cst_83 = arith.constant 5.000000e-01 : f32
      %215 = vector.broadcast %cst_83 : f32 to vector<1x32xf32>
      %216 = arith.addf %214, %215 : vector<1x32xf32>
      %217 = vector.extract_strided_slice %206 {offsets = [0, 64], sizes = [1, 32], strides = [1, 1]} : vector<1x128xf32> to vector<1x32xf32>
      %218 = vector.extract_strided_slice %206 {offsets = [0, 96], sizes = [1, 32], strides = [1, 1]} : vector<1x128xf32> to vector<1x32xf32>
      %cst_84 = arith.constant 5.000000e-01 : f32
      %219 = vector.broadcast %cst_84 : f32 to vector<1x32xf32>
      %220 = arith.mulf %219, %218 : vector<1x32xf32>
      %cst_85 = arith.constant 5.000000e-01 : f32
      %221 = vector.broadcast %cst_85 : f32 to vector<1x32xf32>
      %222 = arith.addf %220, %221 : vector<1x32xf32>
      %223 = arith.mulf %216, %200 : vector<1x32xf32>
      %224 = arith.mulf %211, %217 : vector<1x32xf32>
      %225 = arith.addf %223, %224 : vector<1x32xf32>
      %226 = math.tanh %225 : vector<1x32xf32>
      %227 = arith.mulf %222, %226 : vector<1x32xf32>
      %228 = tpu.concatenate %52, %77, %102, %127, %152, %177, %202, %227 in 0 : vector<1x32xf32>, vector<1x32xf32>, vector<1x32xf32>, vector<1x32xf32>, vector<1x32xf32>, vector<1x32xf32>, vector<1x32xf32>, vector<1x32xf32> -> vector<8x32xf32>
      %229 = arith.index_cast %25 : i32 to index
      %c0_86 = arith.constant 0 : index
      %230 = vector.load %arg11[%229, %c0_86] : memref<16x32xf32, #tpu.memory_space<vmem>>, vector<8x32xf32>
      tpu.vector_store %arg11[%229, %c0_86], %228 {strides = array<i32>} : memref<16x32xf32, #tpu.memory_space<vmem>>, vector<8x32xf32>,
      scf.yield %227, %225 : vector<1x32xf32>, vector<1x32xf32>
    }
    %c2_i32_15 = arith.constant 2 : i32
    %c0_16 = arith.constant 0 : index
    %c0_17 = arith.constant 0 : index
    %15 = vector.load %arg12[%c0_16, %c0_17] : memref<1x32xf32, #tpu.memory_space<vmem>>, vector<1x32xf32>
    tpu.vector_store %arg12[%c0_16, %c0_17], %14#0 {strides = array<i32>} : memref<1x32xf32, #tpu.memory_space<vmem>>, vector<1x32xf32>,
    %c0_18 = arith.constant 0 : index
    %c0_19 = arith.constant 0 : index
    %16 = vector.load %arg13[%c0_18, %c0_19] : memref<1x32xf32, #tpu.memory_space<vmem>>, vector<1x32xf32>
    tpu.vector_store %arg13[%c0_18, %c0_19], %14#1 {strides = array<i32>} : memref<1x32xf32, #tpu.memory_space<vmem>>, vector<1x32xf32>,
    %c0_20 = arith.constant 0 : index
    %c0_21 = arith.constant 0 : index
    %17 = vector.load %arg11[%c0_20, %c0_21] : memref<16x32xf32, #tpu.memory_space<vmem>>, vector<16x32xf32>
    %c0_22 = arith.constant 0 : index
    %c0_23 = arith.constant 0 : index
    %18 = vector.load %arg7[%c0_22, %c0_23] : memref<32x8xf32, #tpu.memory_space<vmem>>, vector<32x8xf32>
    %cst_24 = arith.constant dense<0.000000e+00> : vector<16x8xf32>
    %19 = tpu.matmul %17, %18, %cst_24 {dimension_numbers = #tpu.dot_dimension_numbers<[1], [0], [0], [1], [0, 0, 1, 1], [], []>} : vector<16x32xf32>, vector<32x8xf32>, vector<16x8xf32> -> vector<16x8xf32>
    %c0_25 = arith.constant 0 : index
    %c0_26 = arith.constant 0 : index
    %20 = vector.load %arg8[%c0_25, %c0_26] : memref<1x8xf32, #tpu.memory_space<vmem>>, vector<1x8xf32>
    %21 = vector.broadcast %20 : vector<1x8xf32> to vector<16x8xf32>
    %22 = arith.addf %19, %21 : vector<16x8xf32>
    %c0_27 = arith.constant 0 : index
    %c0_28 = arith.constant 0 : index
    %23 = vector.load %arg9[%c0_27, %c0_28] : memref<16x8xf32, #tpu.memory_space<vmem>>, vector<16x8xf32>
    tpu.vector_store %arg9[%c0_27, %c0_28], %22 {strides = array<i32>} : memref<16x8xf32, #tpu.memory_space<vmem>>, vector<16x8xf32>,
    return
  }
  func.func @transform_0(%arg0: i32) -> (i32, i32) {
    %c0_i32 = arith.constant 0 : i32
    %c0_i32_0 = arith.constant 0 : i32
    return %arg0, %c0_i32 : i32, i32
  }
  func.func @transform_1(%arg0: i32) -> (i32, i32) {
    %c0_i32 = arith.constant 0 : i32
    %c0_i32_0 = arith.constant 0 : i32
    %c0_i32_1 = arith.constant 0 : i32
    return %c0_i32, %c0_i32_0 : i32, i32
  }
  func.func @transform_2(%arg0: i32) -> (i32, i32) {
    %c0_i32 = arith.constant 0 : i32
    %c0_i32_0 = arith.constant 0 : i32
    %c0_i32_1 = arith.constant 0 : i32
    return %c0_i32, %c0_i32_0 : i32, i32
  }
  func.func @transform_3(%arg0: i32) -> (i32, i32) {
    %c0_i32 = arith.constant 0 : i32
    %c0_i32_0 = arith.constant 0 : i32
    %c0_i32_1 = arith.constant 0 : i32
    return %c0_i32, %c0_i32_0 : i32, i32
  }
  func.func @transform_4(%arg0: i32) -> (i32, i32) {
    %c0_i32 = arith.constant 0 : i32
    %c0_i32_0 = arith.constant 0 : i32
    %c0_i32_1 = arith.constant 0 : i32
    return %c0_i32, %c0_i32_0 : i32, i32
  }
  func.func @transform_5(%arg0: i32) -> (i32, i32) {
    %c0_i32 = arith.constant 0 : i32
    %c0_i32_0 = arith.constant 0 : i32
    %c0_i32_1 = arith.constant 0 : i32
    return %c0_i32, %c0_i32_0 : i32, i32
  }
  func.func @transform_6(%arg0: i32) -> (i32, i32) {
    %c0_i32 = arith.constant 0 : i32
    %c0_i32_0 = arith.constant 0 : i32
    %c0_i32_1 = arith.constant 0 : i32
    return %c0_i32, %c0_i32_0 : i32, i32
  }
  func.func @transform_7(%arg0: i32) -> (i32, i32) {
    %c0_i32 = arith.constant 0 : i32
    %c0_i32_0 = arith.constant 0 : i32
    %c0_i32_1 = arith.constant 0 : i32
    return %c0_i32, %c0_i32_0 : i32, i32
  }
  func.func @transform_8(%arg0: i32) -> (i32, i32) {
    %c0_i32 = arith.constant 0 : i32
    %c0_i32_0 = arith.constant 0 : i32
    return %arg0, %c0_i32 : i32, i32
  }
}

</mosaic_0001>

<llo_original>
// kernel: lambda_lstm_forward.1
$region0: #{lambda_lstm_forward.1}
  #allocation0 [shape = 'u32[]', space=smem, size = 0x4, offset = 0x4, fixed_abs, tag = 'smem constant byte address 0x4 - core index']
  #allocation1 [shape = 'u32[144,128]{1,0:T(1,128)}', space=vmem, size = 0x12000, scoped, tag = 'internal scratch']
  #allocation2 [shape = 'f32[16,128]{1,0:T(8,128)}', space=vmem, size = 0x2000, scoped, tag = 'scratch operand']
  #allocation3 [shape = 'f32[16,32]{1,0:T(8,128)}', space=vmem, size = 0x2000, scoped, tag = 'scratch operand']
  #allocation4 [shape = 'f32[1,32]{1,0:T(1,128)}', space=vmem, size = 0x200, scoped, tag = 'scratch operand']
  #allocation5 [shape = 'f32[1,32]{1,0:T(1,128)}', space=vmem, size = 0x200, scoped, tag = 'scratch operand']
  %s0 = inlined_call_operand.vmem [shape: f32[16,8], index: 0, kind: input, shape index: {}]
  %s1 = inlined_call_operand.hbm [shape: f32[8,128], index: 1, kind: input, shape index: {}]
  %s2 = inlined_call_operand.vmem [shape: f32[32,128], index: 2, kind: input, shape index: {}]
  %s3 = inlined_call_operand.vmem [shape: f32[1,128], index: 3, kind: input, shape index: {}]
  %s4 = inlined_call_operand.vmem [shape: f32[1,32], index: 4, kind: input, shape index: {}, may-alias: {4,5}]
  %s5 = inlined_call_operand.vmem [shape: f32[1,32], index: 5, kind: input, shape index: {}, may-alias: {4,5}]
  %s6 = inlined_call_operand.vmem [shape: f32[32,8], index: 6, kind: input, shape index: {}]
  %s7 = inlined_call_operand.vmem [shape: f32[1,8], index: 7, kind: input, shape index: {}]
  %s8 = inlined_call_operand.vmem [shape: f32[16,8], index: 8, kind: output, shape index: {}]
  %s9 = sld [smem:[#allocation0]]
  $region57: #{lambda_lstm_forward.1} parent=0
    _
  %s11 = ssub.s32 1, %s9
  %s12 = scalar_select 0, %s11, %s9
  $region1: #{lambda_lstm_forward.1} parent=0
    #allocation6 [shape = 'u8[4096]{0}', space=vmem, size = 0x1000, scoped, tag = 'input window, operand 1, single buffered']
    #allocation7 [shape = 's32[1]{0}', space=sflag, size = 0x4, scoped, tag = 'scoped memory for lambda_lstm_forward.1']
    %13 = vsyncpa [#allocation7], 0
    // Predicated region
    $region2: #{lambda_lstm_forward.1} parent=1 // pred_check
      _
    $region3: #{lambda_lstm_forward.1} parent=1 // pred_check_branch
      %15 = sbr.rel (0) target = $region5
    $region4: #{lambda_lstm_forward.1} parent=1 // pred_region
      _
    $region5: #{lambda_lstm_forward.1} parent=1 // pred_fallthru
      _
    // Predicated region
    $region6: #{lambda_lstm_forward.1} parent=1 // pred_check
      _
    $region7: #{lambda_lstm_forward.1} parent=1 // pred_check_branch
      %17 = sbr.rel (0) target = $region9
    $region8: #{lambda_lstm_forward.1} parent=1 // pred_region
      %s19 = ssub.s32 128, 128
      %20 = vsyncadd [#allocation7], %s19
      %s22 = sshll.u32 [#allocation6], 4
      %s23 = int_to_ptr.vmem [resolvable:$true] %s22
      %25 = dma.hbm_to_vmem [thread:$0]  %s1, 128, %s23, [#allocation7]
    $region9: #{lambda_lstm_forward.1} parent=1 // pred_fallthru
      _
    // Predicated region
    $region10: #{lambda_lstm_forward.1} parent=1 // pred_check
      _
    $region11: #{lambda_lstm_forward.1} parent=1 // pred_check_branch
      %27 = sbr.rel (0) target = $region13
    $region12: #{lambda_lstm_forward.1} parent=1 // pred_region
      _
    $region13: #{lambda_lstm_forward.1} parent=1 // pred_fallthru
      _
    // Predicated region
    $region14: #{lambda_lstm_forward.1} parent=1 // pred_check
      _
    $region15: #{lambda_lstm_forward.1} parent=1 // pred_check_branch
      %29 = sbr.rel (0) target = $region17
    $region16: #{lambda_lstm_forward.1} parent=1 // pred_region
      _
    $region17: #{lambda_lstm_forward.1} parent=1 // pred_fallthru
      _
    // Predicated region
    $region18: #{lambda_lstm_forward.1} parent=1 // pred_check
      _
    $region19: #{lambda_lstm_forward.1} parent=1 // pred_check_branch
      %31 = sbr.rel (0) target = $region21
    $region20: #{lambda_lstm_forward.1} parent=1 // pred_region
      _
    $region21: #{lambda_lstm_forward.1} parent=1 // pred_fallthru
      _
    // Predicated region
    $region22: #{lambda_lstm_forward.1} parent=1 // pred_check
      _
    $region23: #{lambda_lstm_forward.1} parent=1 // pred_check_branch
      %33 = sbr.rel (0) target = $region25
    $region24: #{lambda_lstm_forward.1} parent=1 // pred_region
      _
    $region25: #{lambda_lstm_forward.1} parent=1 // pred_fallthru
      _
    // Predicated region
    $region26: #{lambda_lstm_forward.1} parent=1 // pred_check
      _
    $region27: #{lambda_lstm_forward.1} parent=1 // pred_check_branch
      %35 = sbr.rel (0) target = $region29
    $region28: #{lambda_lstm_forward.1} parent=1 // pred_region
      _
    $region29: #{lambda_lstm_forward.1} parent=1 // pred_fallthru
      _
    // Predicated region
    $region30: #{lambda_lstm_forward.1} parent=1 // pred_check
      _
    $region31: #{lambda_lstm_forward.1} parent=1 // pred_check_branch
      %37 = sbr.rel (0) target = $region33
    $region32: #{lambda_lstm_forward.1} parent=1 // pred_region
      _
    $region33: #{lambda_lstm_forward.1} parent=1 // pred_fallthru
      _
    // Predicated region
    $region34: #{lambda_lstm_forward.1} parent=1 // pred_check
      _
    $region35: #{lambda_lstm_forward.1} parent=1 // pred_check_branch
      %39 = sbr.rel (0) target = $region37
    $region36: #{lambda_lstm_forward.1} parent=1 // pred_region
      %40 = dma.done [#allocation7], 128
    $region37: #{lambda_lstm_forward.1} parent=1 // pred_fallthru
      _
    %p41 = scmp.eq.s32.totalorder 0, 0
    // Predicated region
    $region38: #{lambda_lstm_forward.1} parent=1 // pred_check
      %p42 = pneg %p41
    $region39: #{lambda_lstm_forward.1} parent=1 // pred_check_branch
      %44 = sbr.rel (%p42) target = $region41
    $region40: #{lambda_lstm_forward.1} parent=1 // pred_region
      %v45 = vld [vmem:[%s4] sm:$0x1]
      %vm46 = vcmask 253952
      %47 = vst.msk [vmem:[#allocation4] sm:$0x1] %vm46, %v45
      %v48 = vld [vmem:[%s5] sm:$0x1]
      %49 = vst.msk [vmem:[#allocation5] sm:$0x1] %vm46, %v48
    $region41: #{lambda_lstm_forward.1} parent=1 // pred_fallthru
      _
    %v50 = vld [vmem:[%s0] sm:$0xff]
    %v51 = vld [vmem:[%s0 + $0x8] sm:$0xff]
    %v52 = vld [vmem:[#allocation6] sm:$0xff]
    %v53 = vld [vmem:[%s3] sm:$0x1]
    %v55 = vlaneseq
    %v56 = vshrl.u32 %v55, 7
    %v57 = vsub.s32 0, %v56
    %v58 = vrot.slane %v53, %v57
    %vm60 = vcmask 64512
    %v62 = vsel %vm60, %v50, 0
    %v65 = vsel %vm60, %v51, 0
    %67 = vmatprep.subr.mxu0 0.0
    %68 = vmatpush1.msra.mxu0 0.0
    %69 = vmatprep.subr.mxu0 0.0
    %70 = vmatpush1.msra.mxu0 0.0
    %71 = vmatprep.subr.mxu0 0.0
    %72 = vmatpush1.msra.mxu0 0.0
    %73 = vmatprep.subr.mxu0 0.0
    %74 = vmatpush1.msra.mxu0 0.0
    %75 = vmatprep.subr.mxu0 0.0
    %76 = vmatpush1.msra.mxu0 0.0
    %77 = vmatprep.subr.mxu0 0.0
    %78 = vmatpush1.msra.mxu0 0.0
    %79 = vmatprep.subr.mxu0 0.0
    %80 = vmatpush1.msra.mxu0 0.0
    %81 = vmatprep.subr.mxu0 0.0
    %82 = vmatpush1.msra.mxu0 0.0
    %83 = vmatprep.subr.mxu0 0.0
    %84 = vmatpush1.msra.mxu0 0.0
    %85 = vmatprep.subr.mxu0 0.0
    %86 = vmatpush1.msra.mxu0 0.0
    %87 = vmatprep.subr.mxu0 0.0
    %88 = vmatpush1.msra.mxu0 0.0
    %89 = vmatprep.subr.mxu0 0.0
    %90 = vmatpush1.msra.mxu0 0.0
    %91 = vmatprep.subr.mxu0 0.0
    %92 = vmatpush1.msra.mxu0 0.0
    %93 = vmatprep.subr.mxu0 0.0
    %94 = vmatpush1.msra.mxu0 0.0
    %95 = vmatprep.subr.mxu0 0.0
    %96 = vmatpush1.msra.mxu0 0.0
    %97 = vmatprep.subr.mxu0 0.0
    %98 = vmatpush1.msra.mxu0 %v52
    %99 = vmatprep.subr.mxu0 0.0
    %100 = vmatpush2.msra.mxu0 0.0
    %101 = vmatprep.subr.mxu0 0.0
    %102 = vmatpush2.msra.mxu0 0.0
    %103 = vmatprep.subr.mxu0 0.0
    %104 = vmatpush2.msra.mxu0 0.0
    %105 = vmatprep.subr.mxu0 0.0
    %106 = vmatpush2.msra.mxu0 0.0
    %107 = vmatprep.subr.mxu0 0.0
    %108 = vmatpush2.msra.mxu0 0.0
    %109 = vmatprep.subr.mxu0 0.0
    %110 = vmatpush2.msra.mxu0 0.0
    %111 = vmatprep.subr.mxu0 0.0
    %112 = vmatpush2.msra.mxu0 0.0
    %113 = vmatprep.subr.mxu0 0.0
    %114 = vmatpush2.msra.mxu0 0.0
    %115 = vmatprep.subr.mxu0 0.0
    %116 = vmatpush2.msra.mxu0 0.0
    %117 = vmatprep.subr.mxu0 0.0
    %118 = vmatpush2.msra.mxu0 0.0
    %119 = vmatprep.subr.mxu0 0.0
    %120 = vmatpush2.msra.mxu0 0.0
    %121 = vmatprep.subr.mxu0 0.0
    %122 = vmatpush2.msra.mxu0 0.0
    %123 = vmatprep.subr.mxu0 0.0
    %124 = vmatpush2.msra.mxu0 0.0
    %125 = vmatprep.subr.mxu0 0.0
    %126 = vmatpush2.msra.mxu0 0.0
    %127 = vmatprep.subr.mxu0 0.0
    %128 = vmatpush2.msra.mxu0 0.0
    %129 = vmatprep.subr.mxu0 0.0
    %130 = vmatpush2.msra.mxu0 0.0
    %131 = vmatprep.mubr.f32.mxu0 0.0
    %132 = vmatmul.mubr.f32.gmra.mxu0 %v62
    %v133 = vpop.f32.mrf.mxu0
    %v134 = vadd.f32 %v58, %v133
    %v135 = vpop.f32.mrf.mxu0
    %136 = vmatprep.mubr.f32.mxu0 0.0
    %137 = vmatmul.mubr.f32.gmra.mxu0 %v65
    %v138 = vpop.f32.mrf.mxu0
    %v139 = vadd.f32 %v58, %v138
    %v140 = vpop.f32.mrf.mxu0
    %141 = vdwg.mxu0
    %142 = vst [vmem:[#allocation2] sm:$0xff] %v134
    %143 = vst [vmem:[#allocation2 + $0x8] sm:$0xff] %v139
    %v144 = vld [vmem:[%s2] sm:$0xff]
    %v145 = vld [vmem:[%s2 + $0x8] sm:$0xff]
    %v146 = vld [vmem:[%s2 + $0x10] sm:$0xff]
    %v147 = vld [vmem:[%s2 + $0x18] sm:$0xff]
    %v148 = vld [vmem:[#allocation4] sm:$0x1]
    %v149 = vld [vmem:[#allocation5] sm:$0x1]
    loop: start=0, step=1, limit=2
    $region42: #{lambda_lstm_forward.1} parent=1 // loop_pre_header
      _
    $region43: #{lambda_lstm_forward.1} parent=1 // loop_header
      %s151 = sphi 0, %s155
      %p152 = scmp.ge.s32.totalorder %s151, 2
      %v156 = vphi %v148, %v1003
      %v157 = vphi %v149, %v1008
    $region44: #{lambda_lstm_forward.1} parent=1 // loop_header_branch
      %154 = sbr.rel (%p152) target = $region48
    $region45: #{lambda_lstm_forward.1} parent=1 // loop_body
      %s158 = smul.u32 %s151, 8
      %s159 = scalar_lea.vmem [#allocation2], %s158
      %v160 = vld [vmem:[%s159] sm:$0xff]
      %vm161 = vcmask 261120
      %v163 = vsel %vm161, %v156, 0
      %165 = vmatprep.subr.mxu0 0.0
      %166 = vmatpush1.msra.mxu0 0.0
      %167 = vmatprep.subr.mxu0 0.0
      %168 = vmatpush1.msra.mxu0 0.0
      %169 = vmatprep.subr.mxu0 0.0
      %170 = vmatpush1.msra.mxu0 0.0
      %171 = vmatprep.subr.mxu0 0.0
      %172 = vmatpush1.msra.mxu0 0.0
      %173 = vmatprep.subr.mxu0 0.0
      %174 = vmatpush1.msra.mxu0 0.0
      %175 = vmatprep.subr.mxu0 0.0
      %176 = vmatpush1.msra.mxu0 0.0
      %177 = vmatprep.subr.mxu0 0.0
      %178 = vmatpush1.msra.mxu0 0.0
      %179 = vmatprep.subr.mxu0 0.0
      %180 = vmatpush1.msra.mxu0 0.0
      %181 = vmatprep.subr.mxu0 0.0
      %182 = vmatpush1.msra.mxu0 0.0
      %183 = vmatprep.subr.mxu0 0.0
      %184 = vmatpush1.msra.mxu0 0.0
      %185 = vmatprep.subr.mxu0 0.0
      %186 = vmatpush1.msra.mxu0 0.0
      %187 = vmatprep.subr.mxu0 0.0
      %188 = vmatpush1.msra.mxu0 0.0
      %189 = vmatprep.subr.mxu0 0.0
      %190 = vmatpush1.msra.mxu0 %v147
      %191 = vmatprep.subr.mxu0 0.0
      %192 = vmatpush1.msra.mxu0 %v146
      %193 = vmatprep.subr.mxu0 0.0
      %194 = vmatpush1.msra.mxu0 %v145
      %195 = vmatprep.subr.mxu0 0.0
      %196 = vmatpush1.msra.mxu0 %v144
      %197 = vmatprep.subr.mxu0 0.0
      %198 = vmatpush2.msra.mxu0 0.0
      %199 = vmatprep.subr.mxu0 0.0
      %200 = vmatpush2.msra.mxu0 0.0
      %201 = vmatprep.subr.mxu0 0.0
      %202 = vmatpush2.msra.mxu0 0.0
      %203 = vmatprep.subr.mxu0 0.0
      %204 = vmatpush2.msra.mxu0 0.0
      %205 = vmatprep.subr.mxu0 0.0
      %206 = vmatpush2.msra.mxu0 0.0
      %207 = vmatprep.subr.mxu0 0.0
      %208 = vmatpush2.msra.mxu0 0.0
      %209 = vmatprep.subr.mxu0 0.0
      %210 = vmatpush2.msra.mxu0 0.0
      %211 = vmatprep.subr.mxu0 0.0
      %212 = vmatpush2.msra.mxu0 0.0
      %213 = vmatprep.subr.mxu0 0.0
      %214 = vmatpush2.msra.mxu0 0.0
      %215 = vmatprep.subr.mxu0 0.0
      %216 = vmatpush2.msra.mxu0 0.0
      %217 = vmatprep.subr.mxu0 0.0
      %218 = vmatpush2.msra.mxu0 0.0
      %219 = vmatprep.subr.mxu0 0.0
      %220 = vmatpush2.msra.mxu0 0.0
      %221 = vmatprep.subr.mxu0 0.0
      %222 = vmatpush2.msra.mxu0 0.0
      %223 = vmatprep.subr.mxu0 0.0
      %224 = vmatpush2.msra.mxu0 0.0
      %225 = vmatprep.subr.mxu0 0.0
      %226 = vmatpush2.msra.mxu0 0.0
      %227 = vmatprep.subr.mxu0 0.0
      %228 = vmatpush2.msra.mxu0 0.0
      %229 = vmatprep.mubr.f32.mxu0 0.0
      %230 = vmatmul.mubr.f32.gmra.mxu0 %v163
      %v231 = vpop.f32.mrf.mxu0
      %v232 = vadd.f32 0.0, %v231
      %v233 = vpop.f32.mrf.mxu0
      %234 = vdwg.mxu0
      %v235 = vadd.f32 %v160, %v232
      %v236 = vtanh.pop %v235
      %v237 = vmul.f32 %v236, 0.5
      %v238 = vadd.f32 %v237, 0.5
      %240 = vrot.lane.b32.xlu0 %v157, 32
      %v241 = vpop.permute.xlu0 %240
      %v243 = vmul.f32 %v238, %v241
      %245 = vrot.lane.b32.xlu0 %v236, 64
      %v246 = vpop.permute.xlu0 %245
      %v248 = vmul.f32 %v238, %v246
      %250 = vrot.lane.b32.xlu0 %v248, 32
      %v251 = vpop.permute.xlu0 %250
      %v253 = vadd.f32 %v243, %v251
      %v254 = vtanh.pop %v253
      %256 = vrot.lane.b32.xlu0 %v254, 64
      %v257 = vpop.permute.xlu0 %256
      %v259 = vmul.f32 %v238, %v257
      %261 = vrot.lane.b32.xlu0 %v259, 32
      %v262 = vpop.permute.xlu0 %261
      %v263 = vsel %vm161, %v262, 0
      %265 = vmatprep.subr.mxu0 0.0
      %266 = vmatpush1.msra.mxu0 0.0
      %267 = vmatprep.subr.mxu0 0.0
      %268 = vmatpush1.msra.mxu0 0.0
      %269 = vmatprep.subr.mxu0 0.0
      %270 = vmatpush1.msra.mxu0 0.0
      %271 = vmatprep.subr.mxu0 0.0
      %272 = vmatpush1.msra.mxu0 0.0
      %273 = vmatprep.subr.mxu0 0.0
      %274 = vmatpush1.msra.mxu0 0.0
      %275 = vmatprep.subr.mxu0 0.0
      %276 = vmatpush1.msra.mxu0 0.0
      %277 = vmatprep.subr.mxu0 0.0
      %278 = vmatpush1.msra.mxu0 0.0
      %279 = vmatprep.subr.mxu0 0.0
      %280 = vmatpush1.msra.mxu0 0.0
      %281 = vmatprep.subr.mxu0 0.0
      %282 = vmatpush1.msra.mxu0 0.0
      %283 = vmatprep.subr.mxu0 0.0
      %284 = vmatpush1.msra.mxu0 0.0
      %285 = vmatprep.subr.mxu0 0.0
      %286 = vmatpush1.msra.mxu0 0.0
      %287 = vmatprep.subr.mxu0 0.0
      %288 = vmatpush1.msra.mxu0 0.0
      %289 = vmatprep.subr.mxu0 0.0
      %290 = vmatpush1.msra.mxu0 %v147
      %291 = vmatprep.subr.mxu0 0.0
      %292 = vmatpush1.msra.mxu0 %v146
      %293 = vmatprep.subr.mxu0 0.0
      %294 = vmatpush1.msra.mxu0 %v145
      %295 = vmatprep.subr.mxu0 0.0
      %296 = vmatpush1.msra.mxu0 %v144
      %297 = vmatprep.subr.mxu0 0.0
      %298 = vmatpush2.msra.mxu0 0.0
      %299 = vmatprep.subr.mxu0 0.0
      %300 = vmatpush2.msra.mxu0 0.0
      %301 = vmatprep.subr.mxu0 0.0
      %302 = vmatpush2.msra.mxu0 0.0
      %303 = vmatprep.subr.mxu0 0.0
      %304 = vmatpush2.msra.mxu0 0.0
      %305 = vmatprep.subr.mxu0 0.0
      %306 = vmatpush2.msra.mxu0 0.0
      %307 = vmatprep.subr.mxu0 0.0
      %308 = vmatpush2.msra.mxu0 0.0
      %309 = vmatprep.subr.mxu0 0.0
      %310 = vmatpush2.msra.mxu0 0.0
      %311 = vmatprep.subr.mxu0 0.0
      %312 = vmatpush2.msra.mxu0 0.0
      %313 = vmatprep.subr.mxu0 0.0
      %314 = vmatpush2.msra.mxu0 0.0
      %315 = vmatprep.subr.mxu0 0.0
      %316 = vmatpush2.msra.mxu0 0.0
      %317 = vmatprep.subr.mxu0 0.0
      %318 = vmatpush2.msra.mxu0 0.0
      %319 = vmatprep.subr.mxu0 0.0
      %320 = vmatpush2.msra.mxu0 0.0
      %321 = vmatprep.subr.mxu0 0.0
      %322 = vmatpush2.msra.mxu0 0.0
      %323 = vmatprep.subr.mxu0 0.0
      %324 = vmatpush2.msra.mxu0 0.0
      %325 = vmatprep.subr.mxu0 0.0
      %326 = vmatpush2.msra.mxu0 0.0
      %327 = vmatprep.subr.mxu0 0.0
      %328 = vmatpush2.msra.mxu0 0.0
      %329 = vmatprep.mubr.f32.mxu0 0.0
      %330 = vmatmul.mubr.f32.gmra.mxu0 %v263
      %v331 = vpop.f32.mrf.mxu0
      %v332 = vadd.f32 0.0, %v331
      %v333 = vpop.f32.mrf.mxu0
      %334 = vdwg.mxu0
      %v336 = vrot.slane %v332, 7
      %v338 = vadd.f32 %v160, %v336
      %v339 = vtanh.pop %v338
      %v340 = vmul.f32 %v339, 0.5
      %v341 = vadd.f32 %v340, 0.5
      %v343 = vrot.slane %v253, 7
      %v345 = vmul.f32 %v341, %v343
      %347 = vrot.lane.b32.xlu0 %v339, 64
      %v348 = vpop.permute.xlu0 %347
      %v350 = vmul.f32 %v341, %v348
      %352 = vrot.lane.b32.xlu0 %v350, 32
      %v353 = vpop.permute.xlu0 %352
      %v355 = vadd.f32 %v345, %v353
      %v356 = vtanh.pop %v355
      %358 = vrot.lane.b32.xlu0 %v356, 64
      %v359 = vpop.permute.xlu0 %358
      %v361 = vmul.f32 %v341, %v359
      %v363 = vrot.slane %v361, 1
      %364 = vrot.lane.b32.xlu0 %v363, 32
      %v365 = vpop.permute.xlu0 %364
      %v366 = vsel %vm161, %v365, 0
      %368 = vmatprep.subr.mxu0 0.0
      %369 = vmatpush1.msra.mxu0 0.0
      %370 = vmatprep.subr.mxu0 0.0
      %371 = vmatpush1.msra.mxu0 0.0
      %372 = vmatprep.subr.mxu0 0.0
      %373 = vmatpush1.msra.mxu0 0.0
      %374 = vmatprep.subr.mxu0 0.0
      %375 = vmatpush1.msra.mxu0 0.0
      %376 = vmatprep.subr.mxu0 0.0
      %377 = vmatpush1.msra.mxu0 0.0
      %378 = vmatprep.subr.mxu0 0.0
      %379 = vmatpush1.msra.mxu0 0.0
      %380 = vmatprep.subr.mxu0 0.0
      %381 = vmatpush1.msra.mxu0 0.0
      %382 = vmatprep.subr.mxu0 0.0
      %383 = vmatpush1.msra.mxu0 0.0
      %384 = vmatprep.subr.mxu0 0.0
      %385 = vmatpush1.msra.mxu0 0.0
      %386 = vmatprep.subr.mxu0 0.0
      %387 = vmatpush1.msra.mxu0 0.0
      %388 = vmatprep.subr.mxu0 0.0
      %389 = vmatpush1.msra.mxu0 0.0
      %390 = vmatprep.subr.mxu0 0.0
      %391 = vmatpush1.msra.mxu0 0.0
      %392 = vmatprep.subr.mxu0 0.0
      %393 = vmatpush1.msra.mxu0 %v147
      %394 = vmatprep.subr.mxu0 0.0
      %395 = vmatpush1.msra.mxu0 %v146
      %396 = vmatprep.subr.mxu0 0.0
      %397 = vmatpush1.msra.mxu0 %v145
      %398 = vmatprep.subr.mxu0 0.0
      %399 = vmatpush1.msra.mxu0 %v144
      %400 = vmatprep.subr.mxu0 0.0
      %401 = vmatpush2.msra.mxu0 0.0
      %402 = vmatprep.subr.mxu0 0.0
      %403 = vmatpush2.msra.mxu0 0.0
      %404 = vmatprep.subr.mxu0 0.0
      %405 = vmatpush2.msra.mxu0 0.0
      %406 = vmatprep.subr.mxu0 0.0
      %407 = vmatpush2.msra.mxu0 0.0
      %408 = vmatprep.subr.mxu0 0.0
      %409 = vmatpush2.msra.mxu0 0.0
      %410 = vmatprep.subr.mxu0 0.0
      %411 = vmatpush2.msra.mxu0 0.0
      %412 = vmatprep.subr.mxu0 0.0
      %413 = vmatpush2.msra.mxu0 0.0
      %414 = vmatprep.subr.mxu0 0.0
      %415 = vmatpush2.msra.mxu0 0.0
      %416 = vmatprep.subr.mxu0 0.0
      %417 = vmatpush2.msra.mxu0 0.0
      %418 = vmatprep.subr.mxu0 0.0
      %419 = vmatpush2.msra.mxu0 0.0
      %420 = vmatprep.subr.mxu0 0.0
      %421 = vmatpush2.msra.mxu0 0.0
      %422 = vmatprep.subr.mxu0 0.0
      %423 = vmatpush2.msra.mxu0 0.0
      %424 = vmatprep.subr.mxu0 0.0
      %425 = vmatpush2.msra.mxu0 0.0
      %426 = vmatprep.subr.mxu0 0.0
      %427 = vmatpush2.msra.mxu0 0.0
      %428 = vmatprep.subr.mxu0 0.0
      %429 = vmatpush2.msra.mxu0 0.0
      %430 = vmatprep.subr.mxu0 0.0
      %431 = vmatpush2.msra.mxu0 0.0
      %432 = vmatprep.mubr.f32.mxu0 0.0
      %433 = vmatmul.mubr.f32.gmra.mxu0 %v366
      %v434 = vpop.f32.mrf.mxu0
      %v435 = vadd.f32 0.0, %v434
      %v436 = vpop.f32.mrf.mxu0
      %437 = vdwg.mxu0
      %v439 = vrot.slane %v435, 6
      %v441 = vadd.f32 %v160, %v439
      %v442 = vtanh.pop %v441
      %v443 = vmul.f32 %v442, 0.5
      %v444 = vadd.f32 %v443, 0.5
      %v446 = vrot.slane %v355, 7
      %v448 = vmul.f32 %v444, %v446
      %450 = vrot.lane.b32.xlu0 %v442, 64
      %v451 = vpop.permute.xlu0 %450
      %v453 = vmul.f32 %v444, %v451
      %455 = vrot.lane.b32.xlu0 %v453, 32
      %v456 = vpop.permute.xlu0 %455
      %v458 = vadd.f32 %v448, %v456
      %v459 = vtanh.pop %v458
      %461 = vrot.lane.b32.xlu0 %v459, 64
      %v462 = vpop.permute.xlu0 %461
      %v464 = vmul.f32 %v444, %v462
      %v466 = vrot.slane %v464, 2
      %467 = vrot.lane.b32.xlu0 %v466, 32
      %v468 = vpop.permute.xlu0 %467
      %v469 = vsel %vm161, %v468, 0
      %471 = vmatprep.subr.mxu0 0.0
      %472 = vmatpush1.msra.mxu0 0.0
      %473 = vmatprep.subr.mxu0 0.0
      %474 = vmatpush1.msra.mxu0 0.0
      %475 = vmatprep.subr.mxu0 0.0
      %476 = vmatpush1.msra.mxu0 0.0
      %477 = vmatprep.subr.mxu0 0.0
      %478 = vmatpush1.msra.mxu0 0.0
      %479 = vmatprep.subr.mxu0 0.0
      %480 = vmatpush1.msra.mxu0 0.0
      %481 = vmatprep.subr.mxu0 0.0
      %482 = vmatpush1.msra.mxu0 0.0
      %483 = vmatprep.subr.mxu0 0.0
      %484 = vmatpush1.msra.mxu0 0.0
      %485 = vmatprep.subr.mxu0 0.0
      %486 = vmatpush1.msra.mxu0 0.0
      %487 = vmatprep.subr.mxu0 0.0
      %488 = vmatpush1.msra.mxu0 0.0
      %489 = vmatprep.subr.mxu0 0.0
      %490 = vmatpush1.msra.mxu0 0.0
      %491 = vmatprep.subr.mxu0 0.0
      %492 = vmatpush1.msra.mxu0 0.0
      %493 = vmatprep.subr.mxu0 0.0
      %494 = vmatpush1.msra.mxu0 0.0
      %495 = vmatprep.subr.mxu0 0.0
      %496 = vmatpush1.msra.mxu0 %v147
      %497 = vmatprep.subr.mxu0 0.0
      %498 = vmatpush1.msra.mxu0 %v146
      %499 = vmatprep.subr.mxu0 0.0
      %500 = vmatpush1.msra.mxu0 %v145
      %501 = vmatprep.subr.mxu0 0.0
      %502 = vmatpush1.msra.mxu0 %v144
      %503 = vmatprep.subr.mxu0 0.0
      %504 = vmatpush2.msra.mxu0 0.0
      %505 = vmatprep.subr.mxu0 0.0
      %506 = vmatpush2.msra.mxu0 0.0
      %507 = vmatprep.subr.mxu0 0.0
      %508 = vmatpush2.msra.mxu0 0.0
      %509 = vmatprep.subr.mxu0 0.0
      %510 = vmatpush2.msra.mxu0 0.0
      %511 = vmatprep.subr.mxu0 0.0
      %512 = vmatpush2.msra.mxu0 0.0
      %513 = vmatprep.subr.mxu0 0.0
      %514 = vmatpush2.msra.mxu0 0.0
      %515 = vmatprep.subr.mxu0 0.0
      %516 = vmatpush2.msra.mxu0 0.0
      %517 = vmatprep.subr.mxu0 0.0
      %518 = vmatpush2.msra.mxu0 0.0
      %519 = vmatprep.subr.mxu0 0.0
      %520 = vmatpush2.msra.mxu0 0.0
      %521 = vmatprep.subr.mxu0 0.0
      %522 = vmatpush2.msra.mxu0 0.0
      %523 = vmatprep.subr.mxu0 0.0
      %524 = vmatpush2.msra.mxu0 0.0
      %525 = vmatprep.subr.mxu0 0.0
      %526 = vmatpush2.msra.mxu0 0.0
      %527 = vmatprep.subr.mxu0 0.0
      %528 = vmatpush2.msra.mxu0 0.0
      %529 = vmatprep.subr.mxu0 0.0
      %530 = vmatpush2.msra.mxu0 0.0
      %531 = vmatprep.subr.mxu0 0.0
      %532 = vmatpush2.msra.mxu0 0.0
      %533 = vmatprep.subr.mxu0 0.0
      %534 = vmatpush2.msra.mxu0 0.0
      %535 = vmatprep.mubr.f32.mxu0 0.0
      %536 = vmatmul.mubr.f32.gmra.mxu0 %v469
      %v537 = vpop.f32.mrf.mxu0
      %v538 = vadd.f32 0.0, %v537
      %v539 = vpop.f32.mrf.mxu0
      %540 = vdwg.mxu0
      %v542 = vrot.slane %v538, 5
      %v544 = vadd.f32 %v160, %v542
      %v545 = vtanh.pop %v544
      %v546 = vmul.f32 %v545, 0.5
      %v547 = vadd.f32 %v546, 0.5
      %v549 = vrot.slane %v458, 7
      %v551 = vmul.f32 %v547, %v549
      %553 = vrot.lane.b32.xlu0 %v545, 64
      %v554 = vpop.permute.xlu0 %553
      %v556 = vmul.f32 %v547, %v554
      %558 = vrot.lane.b32.xlu0 %v556, 32
      %v559 = vpop.permute.xlu0 %558
      %v561 = vadd.f32 %v551, %v559
      %v562 = vtanh.pop %v561
      %564 = vrot.lane.b32.xlu0 %v562, 64
      %v565 = vpop.permute.xlu0 %564
      %v567 = vmul.f32 %v547, %v565
      %v569 = vrot.slane %v567, 3
      %570 = vrot.lane.b32.xlu0 %v569, 32
      %v571 = vpop.permute.xlu0 %570
      %v572 = vsel %vm161, %v571, 0
      %574 = vmatprep.subr.mxu0 0.0
      %575 = vmatpush1.msra.mxu0 0.0
      %576 = vmatprep.subr.mxu0 0.0
      %577 = vmatpush1.msra.mxu0 0.0
      %578 = vmatprep.subr.mxu0 0.0
      %579 = vmatpush1.msra.mxu0 0.0
      %580 = vmatprep.subr.mxu0 0.0
      %581 = vmatpush1.msra.mxu0 0.0
      %582 = vmatprep.subr.mxu0 0.0
      %583 = vmatpush1.msra.mxu0 0.0
      %584 = vmatprep.subr.mxu0 0.0
      %585 = vmatpush1.msra.mxu0 0.0
      %586 = vmatprep.subr.mxu0 0.0
      %587 = vmatpush1.msra.mxu0 0.0
      %588 = vmatprep.subr.mxu0 0.0
      %589 = vmatpush1.msra.mxu0 0.0
      %590 = vmatprep.subr.mxu0 0.0
      %591 = vmatpush1.msra.mxu0 0.0
      %592 = vmatprep.subr.mxu0 0.0
      %593 = vmatpush1.msra.mxu0 0.0
      %594 = vmatprep.subr.mxu0 0.0
      %595 = vmatpush1.msra.mxu0 0.0
      %596 = vmatprep.subr.mxu0 0.0
      %597 = vmatpush1.msra.mxu0 0.0
      %598 = vmatprep.subr.mxu0 0.0
      %599 = vmatpush1.msra.mxu0 %v147
      %600 = vmatprep.subr.mxu0 0.0
      %601 = vmatpush1.msra.mxu0 %v146
      %602 = vmatprep.subr.mxu0 0.0
      %603 = vmatpush1.msra.mxu0 %v145
      %604 = vmatprep.subr.mxu0 0.0
      %605 = vmatpush1.msra.mxu0 %v144
      %606 = vmatprep.subr.mxu0 0.0
      %607 = vmatpush2.msra.mxu0 0.0
      %608 = vmatprep.subr.mxu0 0.0
      %609 = vmatpush2.msra.mxu0 0.0
      %610 = vmatprep.subr.mxu0 0.0
      %611 = vmatpush2.msra.mxu0 0.0
      %612 = vmatprep.subr.mxu0 0.0
      %613 = vmatpush2.msra.mxu0 0.0
      %614 = vmatprep.subr.mxu0 0.0
      %615 = vmatpush2.msra.mxu0 0.0
      %616 = vmatprep.subr.mxu0 0.0
      %617 = vmatpush2.msra.mxu0 0.0
      %618 = vmatprep.subr.mxu0 0.0
      %619 = vmatpush2.msra.mxu0 0.0
      %620 = vmatprep.subr.mxu0 0.0
      %621 = vmatpush2.msra.mxu0 0.0
      %622 = vmatprep.subr.mxu0 0.0
      %623 = vmatpush2.msra.mxu0 0.0
      %624 = vmatprep.subr.mxu0 0.0
      %625 = vmatpush2.msra.mxu0 0.0
      %626 = vmatprep.subr.mxu0 0.0
      %627 = vmatpush2.msra.mxu0 0.0
      %628 = vmatprep.subr.mxu0 0.0
      %629 = vmatpush2.msra.mxu0 0.0
      %630 = vmatprep.subr.mxu0 0.0
      %631 = vmatpush2.msra.mxu0 0.0
      %632 = vmatprep.subr.mxu0 0.0
      %633 = vmatpush2.msra.mxu0 0.0
      %634 = vmatprep.subr.mxu0 0.0
      %635 = vmatpush2.msra.mxu0 0.0
      %636 = vmatprep.subr.mxu0 0.0
      %637 = vmatpush2.msra.mxu0 0.0
      %638 = vmatprep.mubr.f32.mxu0 0.0
      %639 = vmatmul.mubr.f32.gmra.mxu0 %v572
      %v640 = vpop.f32.mrf.mxu0
      %v641 = vadd.f32 0.0, %v640
      %v642 = vpop.f32.mrf.mxu0
      %643 = vdwg.mxu0
      %v645 = vrot.slane %v641, 4
      %v647 = vadd.f32 %v160, %v645
      %v648 = vtanh.pop %v647
      %v649 = vmul.f32 %v648, 0.5
      %v650 = vadd.f32 %v649, 0.5
      %v652 = vrot.slane %v561, 7
      %v654 = vmul.f32 %v650, %v652
      %656 = vrot.lane.b32.xlu0 %v648, 64
      %v657 = vpop.permute.xlu0 %656
      %v659 = vmul.f32 %v650, %v657
      %661 = vrot.lane.b32.xlu0 %v659, 32
      %v662 = vpop.permute.xlu0 %661
      %v664 = vadd.f32 %v654, %v662
      %v665 = vtanh.pop %v664
      %667 = vrot.lane.b32.xlu0 %v665, 64
      %v668 = vpop.permute.xlu0 %667
      %v670 = vmul.f32 %v650, %v668
      %v672 = vrot.slane %v670, 4
      %673 = vrot.lane.b32.xlu0 %v672, 32
      %v674 = vpop.permute.xlu0 %673
      %v675 = vsel %vm161, %v674, 0
      %677 = vmatprep.subr.mxu0 0.0
      %678 = vmatpush1.msra.mxu0 0.0
      %679 = vmatprep.subr.mxu0 0.0
      %680 = vmatpush1.msra.mxu0 0.0
      %681 = vmatprep.subr.mxu0 0.0
      %682 = vmatpush1.msra.mxu0 0.0
      %683 = vmatprep.subr.mxu0 0.0
      %684 = vmatpush1.msra.mxu0 0.0
      %685 = vmatprep.subr.mxu0 0.0
      %686 = vmatpush1.msra.mxu0 0.0
      %687 = vmatprep.subr.mxu0 0.0
      %688 = vmatpush1.msra.mxu0 0.0
      %689 = vmatprep.subr.mxu0 0.0
      %690 = vmatpush1.msra.mxu0 0.0
      %691 = vmatprep.subr.mxu0 0.0
      %692 = vmatpush1.msra.mxu0 0.0
      %693 = vmatprep.subr.mxu0 0.0
      %694 = vmatpush1.msra.mxu0 0.0
      %695 = vmatprep.subr.mxu0 0.0
      %696 = vmatpush1.msra.mxu0 0.0
      %697 = vmatprep.subr.mxu0 0.0
      %698 = vmatpush1.msra.mxu0 0.0
      %699 = vmatprep.subr.mxu0 0.0
      %700 = vmatpush1.msra.mxu0 0.0
      %701 = vmatprep.subr.mxu0 0.0
      %702 = vmatpush1.msra.mxu0 %v147
      %703 = vmatprep.subr.mxu0 0.0
      %704 = vmatpush1.msra.mxu0 %v146
      %705 = vmatprep.subr.mxu0 0.0
      %706 = vmatpush1.msra.mxu0 %v145
      %707 = vmatprep.subr.mxu0 0.0
      %708 = vmatpush1.msra.mxu0 %v144
      %709 = vmatprep.subr.mxu0 0.0
      %710 = vmatpush2.msra.mxu0 0.0
      %711 = vmatprep.subr.mxu0 0.0
      %712 = vmatpush2.msra.mxu0 0.0
      %713 = vmatprep.subr.mxu0 0.0
      %714 = vmatpush2.msra.mxu0 0.0
      %715 = vmatprep.subr.mxu0 0.0
      %716 = vmatpush2.msra.mxu0 0.0
      %717 = vmatprep.subr.mxu0 0.0
      %718 = vmatpush2.msra.mxu0 0.0
      %719 = vmatprep.subr.mxu0 0.0
      %720 = vmatpush2.msra.mxu0 0.0
      %721 = vmatprep.subr.mxu0 0.0
      %722 = vmatpush2.msra.mxu0 0.0
      %723 = vmatprep.subr.mxu0 0.0
      %724 = vmatpush2.msra.mxu0 0.0
      %725 = vmatprep.subr.mxu0 0.0
      %726 = vmatpush2.msra.mxu0 0.0
      %727 = vmatprep.subr.mxu0 0.0
      %728 = vmatpush2.msra.mxu0 0.0
      %729 = vmatprep.subr.mxu0 0.0
      %730 = vmatpush2.msra.mxu0 0.0
      %731 = vmatprep.subr.mxu0 0.0
      %732 = vmatpush2.msra.mxu0 0.0
      %733 = vmatprep.subr.mxu0 0.0
      %734 = vmatpush2.msra.mxu0 0.0
      %735 = vmatprep.subr.mxu0 0.0
      %736 = vmatpush2.msra.mxu0 0.0
      %737 = vmatprep.subr.mxu0 0.0
      %738 = vmatpush2.msra.mxu0 0.0
      %739 = vmatprep.subr.mxu0 0.0
      %740 = vmatpush2.msra.mxu0 0.0
      %741 = vmatprep.mubr.f32.mxu0 0.0
      %742 = vmatmul.mubr.f32.gmra.mxu0 %v675
      %v743 = vpop.f32.mrf.mxu0
      %v744 = vadd.f32 0.0, %v743
      %v745 = vpop.f32.mrf.mxu0
      %746 = vdwg.mxu0
      %v748 = vrot.slane %v744, 3
      %v750 = vadd.f32 %v160, %v748
      %v751 = vtanh.pop %v750
      %v752 = vmul.f32 %v751, 0.5
      %v753 = vadd.f32 %v752, 0.5
      %v755 = vrot.slane %v664, 7
      %v757 = vmul.f32 %v753, %v755
      %759 = vrot.lane.b32.xlu0 %v751, 64
      %v760 = vpop.permute.xlu0 %759
      %v762 = vmul.f32 %v753, %v760
      %764 = vrot.lane.b32.xlu0 %v762, 32
      %v765 = vpop.permute.xlu0 %764
      %v767 = vadd.f32 %v757, %v765
      %v768 = vtanh.pop %v767
      %770 = vrot.lane.b32.xlu0 %v768, 64
      %v771 = vpop.permute.xlu0 %770
      %v773 = vmul.f32 %v753, %v771
      %v775 = vrot.slane %v773, 5
      %776 = vrot.lane.b32.xlu0 %v775, 32
      %v777 = vpop.permute.xlu0 %776
      %v778 = vsel %vm161, %v777, 0
      %780 = vmatprep.subr.mxu0 0.0
      %781 = vmatpush1.msra.mxu0 0.0
      %782 = vmatprep.subr.mxu0 0.0
      %783 = vmatpush1.msra.mxu0 0.0
      %784 = vmatprep.subr.mxu0 0.0
      %785 = vmatpush1.msra.mxu0 0.0
      %786 = vmatprep.subr.mxu0 0.0
      %787 = vmatpush1.msra.mxu0 0.0
      %788 = vmatprep.subr.mxu0 0.0
      %789 = vmatpush1.msra.mxu0 0.0
      %790 = vmatprep.subr.mxu0 0.0
      %791 = vmatpush1.msra.mxu0 0.0
      %792 = vmatprep.subr.mxu0 0.0
      %793 = vmatpush1.msra.mxu0 0.0
      %794 = vmatprep.subr.mxu0 0.0
      %795 = vmatpush1.msra.mxu0 0.0
      %796 = vmatprep.subr.mxu0 0.0
      %797 = vmatpush1.msra.mxu0 0.0
      %798 = vmatprep.subr.mxu0 0.0
      %799 = vmatpush1.msra.mxu0 0.0
      %800 = vmatprep.subr.mxu0 0.0
      %801 = vmatpush1.msra.mxu0 0.0
      %802 = vmatprep.subr.mxu0 0.0
      %803 = vmatpush1.msra.mxu0 0.0
      %804 = vmatprep.subr.mxu0 0.0
      %805 = vmatpush1.msra.mxu0 %v147
      %806 = vmatprep.subr.mxu0 0.0
      %807 = vmatpush1.msra.mxu0 %v146
      %808 = vmatprep.subr.mxu0 0.0
      %809 = vmatpush1.msra.mxu0 %v145
      %810 = vmatprep.subr.mxu0 0.0
      %811 = vmatpush1.msra.mxu0 %v144
      %812 = vmatprep.subr.mxu0 0.0
      %813 = vmatpush2.msra.mxu0 0.0
      %814 = vmatprep.subr.mxu0 0.0
      %815 = vmatpush2.msra.mxu0 0.0
      %816 = vmatprep.subr.mxu0 0.0
      %817 = vmatpush2.msra.mxu0 0.0
      %818 = vmatprep.subr.mxu0 0.0
      %819 = vmatpush2.msra.mxu0 0.0
      %820 = vmatprep.subr.mxu0 0.0
      %821 = vmatpush2.msra.mxu0 0.0
      %822 = vmatprep.subr.mxu0 0.0
      %823 = vmatpush2.msra.mxu0 0.0
      %824 = vmatprep.subr.mxu0 0.0
      %825 = vmatpush2.msra.mxu0 0.0
      %826 = vmatprep.subr.mxu0 0.0
      %827 = vmatpush2.msra.mxu0 0.0
      %828 = vmatprep.subr.mxu0 0.0
      %829 = vmatpush2.msra.mxu0 0.0
      %830 = vmatprep.subr.mxu0 0.0
      %831 = vmatpush2.msra.mxu0 0.0
      %832 = vmatprep.subr.mxu0 0.0
      %833 = vmatpush2.msra.mxu0 0.0
      %834 = vmatprep.subr.mxu0 0.0
      %835 = vmatpush2.msra.mxu0 0.0
      %836 = vmatprep.subr.mxu0 0.0
      %837 = vmatpush2.msra.mxu0 0.0
      %838 = vmatprep.subr.mxu0 0.0
      %839 = vmatpush2.msra.mxu0 0.0
      %840 = vmatprep.subr.mxu0 0.0
      %841 = vmatpush2.msra.mxu0 0.0
      %842 = vmatprep.subr.mxu0 0.0
      %843 = vmatpush2.msra.mxu0 0.0
      %844 = vmatprep.mubr.f32.mxu0 0.0
      %845 = vmatmul.mubr.f32.gmra.mxu0 %v778
      %v846 = vpop.f32.mrf.mxu0
      %v847 = vadd.f32 0.0, %v846
      %v848 = vpop.f32.mrf.mxu0
      %849 = vdwg.mxu0
      %v851 = vrot.slane %v847, 2
      %v853 = vadd.f32 %v160, %v851
      %v854 = vtanh.pop %v853
      %v855 = vmul.f32 %v854, 0.5
      %v856 = vadd.f32 %v855, 0.5
      %v858 = vrot.slane %v767, 7
      %v860 = vmul.f32 %v856, %v858
      %862 = vrot.lane.b32.xlu0 %v854, 64
      %v863 = vpop.permute.xlu0 %862
      %v865 = vmul.f32 %v856, %v863
      %867 = vrot.lane.b32.xlu0 %v865, 32
      %v868 = vpop.permute.xlu0 %867
      %v870 = vadd.f32 %v860, %v868
      %v871 = vtanh.pop %v870
      %873 = vrot.lane.b32.xlu0 %v871, 64
      %v874 = vpop.permute.xlu0 %873
      %v876 = vmul.f32 %v856, %v874
      %v878 = vrot.slane %v876, 6
      %879 = vrot.lane.b32.xlu0 %v878, 32
      %v880 = vpop.permute.xlu0 %879
      %v881 = vsel %vm161, %v880, 0
      %883 = vmatprep.subr.mxu0 0.0
      %884 = vmatpush1.msra.mxu0 0.0
      %885 = vmatprep.subr.mxu0 0.0
      %886 = vmatpush1.msra.mxu0 0.0
      %887 = vmatprep.subr.mxu0 0.0
      %888 = vmatpush1.msra.mxu0 0.0
      %889 = vmatprep.subr.mxu0 0.0
      %890 = vmatpush1.msra.mxu0 0.0
      %891 = vmatprep.subr.mxu0 0.0
      %892 = vmatpush1.msra.mxu0 0.0
      %893 = vmatprep.subr.mxu0 0.0
      %894 = vmatpush1.msra.mxu0 0.0
      %895 = vmatprep.subr.mxu0 0.0
      %896 = vmatpush1.msra.mxu0 0.0
      %897 = vmatprep.subr.mxu0 0.0
      %898 = vmatpush1.msra.mxu0 0.0
      %899 = vmatprep.subr.mxu0 0.0
      %900 = vmatpush1.msra.mxu0 0.0
      %901 = vmatprep.subr.mxu0 0.0
      %902 = vmatpush1.msra.mxu0 0.0
      %903 = vmatprep.subr.mxu0 0.0
      %904 = vmatpush1.msra.mxu0 0.0
      %905 = vmatprep.subr.mxu0 0.0
      %906 = vmatpush1.msra.mxu0 0.0
      %907 = vmatprep.subr.mxu0 0.0
      %908 = vmatpush1.msra.mxu0 %v147
      %909 = vmatprep.subr.mxu0 0.0
      %910 = vmatpush1.msra.mxu0 %v146
      %911 = vmatprep.subr.mxu0 0.0
      %912 = vmatpush1.msra.mxu0 %v145
      %913 = vmatprep.subr.mxu0 0.0
      %914 = vmatpush1.msra.mxu0 %v144
      %915 = vmatprep.subr.mxu0 0.0
      %916 = vmatpush2.msra.mxu0 0.0
      %917 = vmatprep.subr.mxu0 0.0
      %918 = vmatpush2.msra.mxu0 0.0
      %919 = vmatprep.subr.mxu0 0.0
      %920 = vmatpush2.msra.mxu0 0.0
      %921 = vmatprep.subr.mxu0 0.0
      %922 = vmatpush2.msra.mxu0 0.0
      %923 = vmatprep.subr.mxu0 0.0
      %924 = vmatpush2.msra.mxu0 0.0
      %925 = vmatprep.subr.mxu0 0.0
      %926 = vmatpush2.msra.mxu0 0.0
      %927 = vmatprep.subr.mxu0 0.0
      %928 = vmatpush2.msra.mxu0 0.0
      %929 = vmatprep.subr.mxu0 0.0
      %930 = vmatpush2.msra.mxu0 0.0
      %931 = vmatprep.subr.mxu0 0.0
      %932 = vmatpush2.msra.mxu0 0.0
      %933 = vmatprep.subr.mxu0 0.0
      %934 = vmatpush2.msra.mxu0 0.0
      %935 = vmatprep.subr.mxu0 0.0
      %936 = vmatpush2.msra.mxu0 0.0
      %937 = vmatprep.subr.mxu0 0.0
      %938 = vmatpush2.msra.mxu0 0.0
      %939 = vmatprep.subr.mxu0 0.0
      %940 = vmatpush2.msra.mxu0 0.0
      %941 = vmatprep.subr.mxu0 0.0
      %942 = vmatpush2.msra.mxu0 0.0
      %943 = vmatprep.subr.mxu0 0.0
      %944 = vmatpush2.msra.mxu0 0.0
      %945 = vmatprep.subr.mxu0 0.0
      %946 = vmatpush2.msra.mxu0 0.0
      %947 = vmatprep.mubr.f32.mxu0 0.0
      %948 = vmatmul.mubr.f32.gmra.mxu0 %v881
      %v949 = vpop.f32.mrf.mxu0
      %v950 = vadd.f32 0.0, %v949
      %v951 = vpop.f32.mrf.mxu0
      %952 = vdwg.mxu0
      %v954 = vrot.slane %v950, 1
      %v956 = vadd.f32 %v160, %v954
      %v957 = vtanh.pop %v956
      %v958 = vmul.f32 %v957, 0.5
      %v959 = vadd.f32 %v958, 0.5
      %v961 = vrot.slane %v870, 7
      %v963 = vmul.f32 %v959, %v961
      %965 = vrot.lane.b32.xlu0 %v957, 64
      %v966 = vpop.permute.xlu0 %965
      %v968 = vmul.f32 %v959, %v966
      %970 = vrot.lane.b32.xlu0 %v968, 32
      %v971 = vpop.permute.xlu0 %970
      %v973 = vadd.f32 %v963, %v971
      %v974 = vtanh.pop %v973
      %976 = vrot.lane.b32.xlu0 %v974, 64
      %v977 = vpop.permute.xlu0 %976
      %v979 = vmul.f32 %v959, %v977
      %vm980 = vcmask 1040384
      %v981 = vsel %vm980, %v259, %v361
      %vm982 = vcmask 1041408
      %v983 = vsel %vm982, %v981, %v464
      %vm984 = vcmask 1042432
      %v985 = vsel %vm984, %v983, %v567
      %vm986 = vcmask 1043456
      %v987 = vsel %vm986, %v985, %v670
      %vm988 = vcmask 1044480
      %v989 = vsel %vm988, %v987, %v773
      %vm990 = vcmask 1045504
      %v991 = vsel %vm990, %v989, %v876
      %vm992 = vcmask 1046528
      %v993 = vsel %vm992, %v991, %v979
      %995 = vrot.lane.b32.xlu0 %v993, 32
      %v996 = vpop.permute.xlu0 %995
      %s998 = scalar_lea.vmem [#allocation3], %s158
      %999 = vst.msk [vmem:[%s998] sm:$0xff] %vm161, %v996
      %v1001 = vrot.slane %v979, 7
      %1002 = vrot.lane.b32.xlu0 %v1001, 32
      %v1003 = vpop.permute.xlu0 %1002
      %v1006 = vrot.slane %v973, 7
      %1007 = vrot.lane.b32.xlu0 %v1006, 96
      %v1008 = vpop.permute.xlu0 %1007
    $region46: #{lambda_lstm_forward.1} parent=1 // loop_footer
      %s155 = sadd.s32 1, %s151
    $region47: #{lambda_lstm_forward.1} parent=1 // loop_footer_branch
      %150 = sbr.rel target = $region43
    $region48: #{lambda_lstm_forward.1} parent=1 // loop_exit
      _
    %vm1010 = vcmask 253952
    %1011 = vst.msk [vmem:[#allocation4] sm:$0x1] %vm1010, %v156
    %1012 = vst.msk [vmem:[#allocation5] sm:$0x1] %vm1010, %v157
    %v1013 = vld [vmem:[#allocation3] sm:$0xff]
    %v1014 = vld [vmem:[#allocation3 + $0x8] sm:$0xff]
    %v1015 = vld [vmem:[%s6] sm:$0xff]
    %v1016 = vld [vmem:[%s6 + $0x8] sm:$0xff]
    %v1017 = vld [vmem:[%s6 + $0x10] sm:$0xff]
    %v1018 = vld [vmem:[%s6 + $0x18] sm:$0xff]
    %v1019 = vld [vmem:[%s7] sm:$0x1]
    %v1021 = vlaneseq
    %v1022 = vshrl.u32 %v1021, 7
    %v1023 = vsub.s32 0, %v1022
    %v1024 = vrot.slane %v1019, %v1023
    %vm1026 = vcmask 261120
    %v1028 = vsel %vm1026, %v1013, 0
    %v1031 = vsel %vm1026, %v1014, 0
    %1033 = vmatprep.subr.mxu0 0.0
    %1034 = vmatpush1.msra.mxu0 0.0
    %1035 = vmatprep.subr.mxu0 0.0
    %1036 = vmatpush1.msra.mxu0 0.0
    %1037 = vmatprep.subr.mxu0 0.0
    %1038 = vmatpush1.msra.mxu0 0.0
    %1039 = vmatprep.subr.mxu0 0.0
    %1040 = vmatpush1.msra.mxu0 0.0
    %1041 = vmatprep.subr.mxu0 0.0
    %1042 = vmatpush1.msra.mxu0 0.0
    %1043 = vmatprep.subr.mxu0 0.0
    %1044 = vmatpush1.msra.mxu0 0.0
    %1045 = vmatprep.subr.mxu0 0.0
    %1046 = vmatpush1.msra.mxu0 0.0
    %1047 = vmatprep.subr.mxu0 0.0
    %1048 = vmatpush1.msra.mxu0 0.0
    %1049 = vmatprep.subr.mxu0 0.0
    %1050 = vmatpush1.msra.mxu0 0.0
    %1051 = vmatprep.subr.mxu0 0.0
    %1052 = vmatpush1.msra.mxu0 0.0
    %1053 = vmatprep.subr.mxu0 0.0
    %1054 = vmatpush1.msra.mxu0 0.0
    %1055 = vmatprep.subr.mxu0 0.0
    %1056 = vmatpush1.msra.mxu0 0.0
    %1057 = vmatprep.subr.mxu0 0.0
    %1058 = vmatpush1.msra.mxu0 %v1018
    %1059 = vmatprep.subr.mxu0 0.0
    %1060 = vmatpush1.msra.mxu0 %v1017
    %1061 = vmatprep.subr.mxu0 0.0
    %1062 = vmatpush1.msra.mxu0 %v1016
    %1063 = vmatprep.subr.mxu0 0.0
    %1064 = vmatpush1.msra.mxu0 %v1015
    %1065 = vmatprep.subr.mxu0 0.0
    %1066 = vmatpush2.msra.mxu0 0.0
    %1067 = vmatprep.subr.mxu0 0.0
    %1068 = vmatpush2.msra.mxu0 0.0
    %1069 = vmatprep.subr.mxu0 0.0
    %1070 = vmatpush2.msra.mxu0 0.0
    %1071 = vmatprep.subr.mxu0 0.0
    %1072 = vmatpush2.msra.mxu0 0.0
    %1073 = vmatprep.subr.mxu0 0.0
    %1074 = vmatpush2.msra.mxu0 0.0
    %1075 = vmatprep.subr.mxu0 0.0
    %1076 = vmatpush2.msra.mxu0 0.0
    %1077 = vmatprep.subr.mxu0 0.0
    %1078 = vmatpush2.msra.mxu0 0.0
    %1079 = vmatprep.subr.mxu0 0.0
    %1080 = vmatpush2.msra.mxu0 0.0
    %1081 = vmatprep.subr.mxu0 0.0
    %1082 = vmatpush2.msra.mxu0 0.0
    %1083 = vmatprep.subr.mxu0 0.0
    %1084 = vmatpush2.msra.mxu0 0.0
    %1085 = vmatprep.subr.mxu0 0.0
    %1086 = vmatpush2.msra.mxu0 0.0
    %1087 = vmatprep.subr.mxu0 0.0
    %1088 = vmatpush2.msra.mxu0 0.0
    %1089 = vmatprep.subr.mxu0 0.0
    %1090 = vmatpush2.msra.mxu0 0.0
    %1091 = vmatprep.subr.mxu0 0.0
    %1092 = vmatpush2.msra.mxu0 0.0
    %1093 = vmatprep.subr.mxu0 0.0
    %1094 = vmatpush2.msra.mxu0 0.0
    %1095 = vmatprep.subr.mxu0 0.0
    %1096 = vmatpush2.msra.mxu0 0.0
    %1097 = vmatprep.mubr.f32.mxu0 0.0
    %1098 = vmatmul.mubr.f32.gmra.mxu0 %v1028
    %v1099 = vpop.f32.mrf.mxu0
    %v1100 = vadd.f32 %v1024, %v1099
    %v1101 = vpop.f32.mrf.mxu0
    %1102 = vmatprep.mubr.f32.mxu0 0.0
    %1103 = vmatmul.mubr.f32.gmra.mxu0 %v1031
    %v1104 = vpop.f32.mrf.mxu0
    %v1105 = vadd.f32 %v1024, %v1104
    %v1106 = vpop.f32.mrf.mxu0
    %1107 = vdwg.mxu0
    %1108 = vst.msk [vmem:[%s8] sm:$0xff] %vm60, %v1100
    %1109 = vst.msk [vmem:[%s8 + $0x8] sm:$0xff] %vm60, %v1105
    // Predicated region
    $region49: #{lambda_lstm_forward.1} parent=1 // pred_check
      _
    $region50: #{lambda_lstm_forward.1} parent=1 // pred_check_branch
      %1111 = sbr.rel (0) target = $region52
    $region51: #{lambda_lstm_forward.1} parent=1 // pred_region
      _
    $region52: #{lambda_lstm_forward.1} parent=1 // pred_fallthru
      _
    // Predicated region
    $region53: #{lambda_lstm_forward.1} parent=1 // pred_check
      _
    $region54: #{lambda_lstm_forward.1} parent=1 // pred_check_branch
      %1113 = sbr.rel (0) target = $region56
    $region55: #{lambda_lstm_forward.1} parent=1 // pred_region
      _
    $region56: #{lambda_lstm_forward.1} parent=1 // pred_fallthru
      _
    %1114 = vsyncpa [#allocation7], 1

</llo_original>
